<compile_context>
chip_gen: v6e
topology: v6e:2x2x1
jax: 0.10.0
libtpu: 0.0.40
codegen_flags: <defaults>
</compile_context>

<pallas_src>
import math
from functools import partial

import jax
import jax.numpy as jnp
from jax.experimental import pallas as pl
from jax.experimental.pallas import tpu as pltpu

OBS_DIM = 97
ACTION_DIM = 9
MAX_ACTION = 0.397
BN_EPS = 1e-5
PAD = 128  # lane-aligned padded width for obs/action dims
DIMS = [OBS_DIM, 512, 512, 256, 128, ACTION_DIM]


def _bcnet_kernel(x_ref,
                  w1, g1, bt1,
                  w2, g2, bt2,
                  w3, g3, bt3,
                  w4, g4, bt4,
                  w5, b5,
                  out_ref, *, n_rows, n_rows_padded):
    """Whole forward pass for one (small) batch resident in VMEM."""
    inv_n = 1.0 / float(n_rows)

    if n_rows_padded != n_rows:
        row_ids = jax.lax.broadcasted_iota(jnp.int32, (n_rows_padded, 1), 0)
        row_mask = (row_ids < n_rows).astype(jnp.float32)
    else:
        row_mask = None

    def lin_bn_relu(h, w_r, g_r, bt_r):
        # Linear (bias omitted: exactly cancelled by BN mean subtraction).
        # bf16 x bf16 -> f32 on the MXU.
        y = jnp.dot(h.astype(jnp.bfloat16), w_r[...],
                    preferred_element_type=jnp.float32)
        # Single-pass batch statistics. Padded rows of h are zero and there is
        # no bias, so they contribute 0 to both sums; divide by the true B.
        s1 = jnp.sum(y, axis=0, keepdims=True)
        s2 = jnp.sum(y * y, axis=0, keepdims=True)
        mean = s1 * inv_n
        var = s2 * inv_n - mean * mean
        # Fused BN affine: one FMA per element.
        scale = g_r[...] * jax.lax.rsqrt(var + BN_EPS)
        shift = bt_r[...] - mean * scale
        h_out = jnp.maximum(y * scale + shift, 0.0)
        if row_mask is not None:
            h_out = h_out * row_mask  # keep padded rows at exactly zero
        return h_out

    h = x_ref[...]
    h = lin_bn_relu(h, w1, g1, bt1)
    h = lin_bn_relu(h, w2, g2, bt2)
    h = lin_bn_relu(h, w3, g3, bt3)
    h = lin_bn_relu(h, w4, g4, bt4)
    # Final Linear (with bias) -> Tanh -> scale
    y = jnp.dot(h.astype(jnp.bfloat16), w5[...],
                preferred_element_type=jnp.float32) + b5[...]
    out_ref[...] = MAX_ACTION * jnp.tanh(y)


def init_params(key):
    """PyTorch-default-style init (uniform +-1/sqrt(fan_in)); deterministic.

    Weights stored bf16 (MXU-native, halves weight DMA). Hidden-layer Linear
    biases are drawn (to keep the key schedule) but NOT returned: under
    training-mode BatchNorm they are mathematically inert.
    """
    keys = jax.random.split(key, 2 * (len(DIMS) - 1))
    params = []
    n_layers = len(DIMS) - 1
    for i in range(n_layers):
        fan_in, fan_out = DIMS[i], DIMS[i + 1]
        bound = 1.0 / math.sqrt(fan_in)
        w = jax.random.uniform(keys[2 * i], (fan_in, fan_out),
                               jnp.float32, -bound, bound)
        b = jax.random.uniform(keys[2 * i + 1], (1, fan_out),
                               jnp.float32, -bound, bound)
        if i == 0:
            # pad obs dim (rows of first weight) to 128 -- matches padded x
            w = jnp.pad(w, ((0, PAD - OBS_DIM), (0, 0)))
        if i == n_layers - 1:
            # pad action dim (cols of last weight / bias) to 128
            w = jnp.pad(w, ((0, 0), (0, PAD - ACTION_DIM)))
            b = jnp.pad(b, ((0, 0), (0, PAD - ACTION_DIM)))
            params += [w.astype(jnp.bfloat16), b]
        else:
            gamma = jnp.ones((1, fan_out), jnp.float32)
            beta = jnp.zeros((1, fan_out), jnp.float32)
            params += [w.astype(jnp.bfloat16), gamma, beta]
    return tuple(params)


@jax.jit
def bcnet_forward(x, params):
    B = x.shape[0]
    B_pad = ((B + 7) // 8) * 8  # f32 sublane tiling needs batch % 8 == 0
    x_pad = jnp.pad(x.astype(jnp.float32),
                    ((0, B_pad - B), (0, PAD - OBS_DIM)))
    kernel = partial(_bcnet_kernel, n_rows=B, n_rows_padded=B_pad)
    inputs = (x_pad,) + tuple(params)
    out = pl.pallas_call(
        kernel,
        out_shape=jax.ShapeDtypeStruct((B_pad, PAD), jnp.float32),
        in_specs=[pl.BlockSpec(memory_space=pltpu.MemorySpace.VMEM)] * len(inputs),
        out_specs=pl.BlockSpec(memory_space=pltpu.MemorySpace.VMEM),
        compiler_params=pltpu.CompilerParams(
            vmem_limit_bytes=32 * 1024 * 1024),
    )(*inputs)
    return out[:B, :ACTION_DIM]


def bcnet_reference(x, params, matmul_dtype=jnp.bfloat16):
    """Pure-JAX reference mirroring the kernel math (for correctness checks)."""
    p = list(params)
    h = jnp.pad(x.astype(jnp.float32), ((0, 0), (0, PAD - OBS_DIM)))
    for i in range(4):
        w, g, bt = p[3 * i:3 * i + 3]
        y = jnp.dot(h.astype(matmul_dtype), w.astype(matmul_dtype),
                    preferred_element_type=jnp.float32)
        mean = jnp.mean(y, axis=0, keepdims=True)
        var = jnp.mean(y * y, axis=0, keepdims=True) - mean * mean
        scale = g * jax.lax.rsqrt(var + BN_EPS)
        h = jnp.maximum(y * scale + (bt - mean * scale), 0.0)
    w5, b5 = p[12], p[13]
    y = jnp.dot(h.astype(matmul_dtype), w5.astype(matmul_dtype),
                preferred_element_type=jnp.float32) + b5
    return (MAX_ACTION * jnp.tanh(y))[:, :ACTION_DIM]


if __name__ == "__main__":
    key = jax.random.PRNGKey(0)
    k_param, k_x = jax.random.split(key)
    params = init_params(k_param)

    B = 8  # small demo batch (sublane-aligned)
    x = jax.random.normal(k_x, (B, OBS_DIM), jnp.float32)

    out = jax.block_until_ready(bcnet_forward(x, params))

    ref_exact = bcnet_reference(x, params)                       # same bf16 math
    ref_f32 = bcnet_reference(x, params, matmul_dtype=jnp.float32)  # semantics sanity

    assert out.shape == (B, ACTION_DIM)
    assert jnp.allclose(out, ref_exact, atol=1e-4, rtol=1e-4), \
        "mismatch vs bf16 reference"
    assert jnp.allclose(out, ref_f32, atol=5e-2), \
        "mismatch vs f32 reference"
    assert jnp.all(jnp.abs(out) <= MAX_ACTION + 1e-6)

    print("KERNEL_OK")
</pallas_src>

<mosaic_0001>
module attributes {stable_mosaic.version = 11 : i64} {
  func.func @_bcnet_kernel(%arg0: memref<8x128xf32, #tpu.memory_space<vmem>>, %arg1: memref<128x512xbf16, #tpu.memory_space<vmem>>, %arg2: memref<1x512xf32, #tpu.memory_space<vmem>>, %arg3: memref<1x512xf32, #tpu.memory_space<vmem>>, %arg4: memref<512x512xbf16, #tpu.memory_space<vmem>>, %arg5: memref<1x512xf32, #tpu.memory_space<vmem>>, %arg6: memref<1x512xf32, #tpu.memory_space<vmem>>, %arg7: memref<512x256xbf16, #tpu.memory_space<vmem>>, %arg8: memref<1x256xf32, #tpu.memory_space<vmem>>, %arg9: memref<1x256xf32, #tpu.memory_space<vmem>>, %arg10: memref<256x128xbf16, #tpu.memory_space<vmem>>, %arg11: memref<1x128xf32, #tpu.memory_space<vmem>>, %arg12: memref<1x128xf32, #tpu.memory_space<vmem>>, %arg13: memref<128x128xbf16, #tpu.memory_space<vmem>>, %arg14: memref<1x128xf32, #tpu.memory_space<vmem>>, %arg15: memref<8x128xf32, #tpu.memory_space<vmem>>) attributes {dimension_semantics = [], scalar_prefetch = 0 : i64, scratch_operands = 0 : i64, tpu.core_type = #tpu.core_type<tc>} {
    %c0 = arith.constant 0 : index
    %c0_0 = arith.constant 0 : index
    %0 = vector.load %arg0[%c0, %c0_0] : memref<8x128xf32, #tpu.memory_space<vmem>>, vector<8x128xf32>
    %1 = arith.truncf %0 : vector<8x128xf32> to vector<8x128xbf16>
    %c0_1 = arith.constant 0 : index
    %c0_2 = arith.constant 0 : index
    %2 = vector.load %arg1[%c0_1, %c0_2] : memref<128x512xbf16, #tpu.memory_space<vmem>>, vector<128x512xbf16>
    %cst = arith.constant dense<0.000000e+00> : vector<8x512xf32>
    %3 = tpu.matmul %1, %2, %cst {dimension_numbers = #tpu.dot_dimension_numbers<[1], [0], [0], [1], [0, 0, 1, 1], [], []>} : vector<8x128xbf16>, vector<128x512xbf16>, vector<8x512xf32> -> vector<8x512xf32>
    %cst_3 = arith.constant dense<0.000000e+00> : vector<512xf32>
    %4 = vector.multi_reduction <add>, %3, %cst_3 [0] : vector<8x512xf32> to vector<512xf32>
    %5 = vector.shape_cast %4 : vector<512xf32> to vector<1x512xf32>
    %6 = arith.mulf %3, %3 : vector<8x512xf32>
    %cst_4 = arith.constant dense<0.000000e+00> : vector<512xf32>
    %7 = vector.multi_reduction <add>, %6, %cst_4 [0] : vector<8x512xf32> to vector<512xf32>
    %8 = vector.shape_cast %7 : vector<512xf32> to vector<1x512xf32>
    %cst_5 = arith.constant 1.250000e-01 : f32
    %9 = vector.broadcast %cst_5 : f32 to vector<1x512xf32>
    %10 = arith.mulf %5, %9 : vector<1x512xf32>
    %cst_6 = arith.constant 1.250000e-01 : f32
    %11 = vector.broadcast %cst_6 : f32 to vector<1x512xf32>
    %12 = arith.mulf %8, %11 : vector<1x512xf32>
    %13 = arith.mulf %10, %10 : vector<1x512xf32>
    %14 = arith.subf %12, %13 : vector<1x512xf32>
    %c0_7 = arith.constant 0 : index
    %c0_8 = arith.constant 0 : index
    %15 = vector.load %arg2[%c0_7, %c0_8] : memref<1x512xf32, #tpu.memory_space<vmem>>, vector<1x512xf32>
    %cst_9 = arith.constant 9.99999974E-6 : f32
    %16 = vector.broadcast %cst_9 : f32 to vector<1x512xf32>
    %17 = arith.addf %14, %16 : vector<1x512xf32>
    %18 = math.rsqrt %17 : vector<1x512xf32>
    %19 = arith.mulf %15, %18 : vector<1x512xf32>
    %c0_10 = arith.constant 0 : index
    %c0_11 = arith.constant 0 : index
    %20 = vector.load %arg3[%c0_10, %c0_11] : memref<1x512xf32, #tpu.memory_space<vmem>>, vector<1x512xf32>
    %21 = arith.mulf %10, %19 : vector<1x512xf32>
    %22 = arith.subf %20, %21 : vector<1x512xf32>
    %23 = vector.broadcast %19 : vector<1x512xf32> to vector<8x512xf32>
    %24 = arith.mulf %3, %23 : vector<8x512xf32>
    %25 = vector.broadcast %22 : vector<1x512xf32> to vector<8x512xf32>
    %26 = arith.addf %24, %25 : vector<8x512xf32>
    %cst_12 = arith.constant 0.000000e+00 : f32
    %27 = vector.broadcast %cst_12 : f32 to vector<8x512xf32>
    %28 = arith.maximumf %26, %27 : vector<8x512xf32>
    %29 = arith.truncf %28 : vector<8x512xf32> to vector<8x512xbf16>
    %c0_13 = arith.constant 0 : index
    %c0_14 = arith.constant 0 : index
    %30 = vector.load %arg4[%c0_13, %c0_14] : memref<512x512xbf16, #tpu.memory_space<vmem>>, vector<512x512xbf16>
    %cst_15 = arith.constant dense<0.000000e+00> : vector<8x512xf32>
    %31 = tpu.matmul %29, %30, %cst_15 {dimension_numbers = #tpu.dot_dimension_numbers<[1], [0], [0], [1], [0, 0, 1, 1], [], []>} : vector<8x512xbf16>, vector<512x512xbf16>, vector<8x512xf32> -> vector<8x512xf32>
    %cst_16 = arith.constant dense<0.000000e+00> : vector<512xf32>
    %32 = vector.multi_reduction <add>, %31, %cst_16 [0] : vector<8x512xf32> to vector<512xf32>
    %33 = vector.shape_cast %32 : vector<512xf32> to vector<1x512xf32>
    %34 = arith.mulf %31, %31 : vector<8x512xf32>
    %cst_17 = arith.constant dense<0.000000e+00> : vector<512xf32>
    %35 = vector.multi_reduction <add>, %34, %cst_17 [0] : vector<8x512xf32> to vector<512xf32>
    %36 = vector.shape_cast %35 : vector<512xf32> to vector<1x512xf32>
    %cst_18 = arith.constant 1.250000e-01 : f32
    %37 = vector.broadcast %cst_18 : f32 to vector<1x512xf32>
    %38 = arith.mulf %33, %37 : vector<1x512xf32>
    %cst_19 = arith.constant 1.250000e-01 : f32
    %39 = vector.broadcast %cst_19 : f32 to vector<1x512xf32>
    %40 = arith.mulf %36, %39 : vector<1x512xf32>
    %41 = arith.mulf %38, %38 : vector<1x512xf32>
    %42 = arith.subf %40, %41 : vector<1x512xf32>
    %c0_20 = arith.constant 0 : index
    %c0_21 = arith.constant 0 : index
    %43 = vector.load %arg5[%c0_20, %c0_21] : memref<1x512xf32, #tpu.memory_space<vmem>>, vector<1x512xf32>
    %cst_22 = arith.constant 9.99999974E-6 : f32
    %44 = vector.broadcast %cst_22 : f32 to vector<1x512xf32>
    %45 = arith.addf %42, %44 : vector<1x512xf32>
    %46 = math.rsqrt %45 : vector<1x512xf32>
    %47 = arith.mulf %43, %46 : vector<1x512xf32>
    %c0_23 = arith.constant 0 : index
    %c0_24 = arith.constant 0 : index
    %48 = vector.load %arg6[%c0_23, %c0_24] : memref<1x512xf32, #tpu.memory_space<vmem>>, vector<1x512xf32>
    %49 = arith.mulf %38, %47 : vector<1x512xf32>
    %50 = arith.subf %48, %49 : vector<1x512xf32>
    %51 = vector.broadcast %47 : vector<1x512xf32> to vector<8x512xf32>
    %52 = arith.mulf %31, %51 : vector<8x512xf32>
    %53 = vector.broadcast %50 : vector<1x512xf32> to vector<8x512xf32>
    %54 = arith.addf %52, %53 : vector<8x512xf32>
    %cst_25 = arith.constant 0.000000e+00 : f32
    %55 = vector.broadcast %cst_25 : f32 to vector<8x512xf32>
    %56 = arith.maximumf %54, %55 : vector<8x512xf32>
    %57 = arith.truncf %56 : vector<8x512xf32> to vector<8x512xbf16>
    %c0_26 = arith.constant 0 : index
    %c0_27 = arith.constant 0 : index
    %58 = vector.load %arg7[%c0_26, %c0_27] : memref<512x256xbf16, #tpu.memory_space<vmem>>, vector<512x256xbf16>
    %cst_28 = arith.constant dense<0.000000e+00> : vector<8x256xf32>
    %59 = tpu.matmul %57, %58, %cst_28 {dimension_numbers = #tpu.dot_dimension_numbers<[1], [0], [0], [1], [0, 0, 1, 1], [], []>} : vector<8x512xbf16>, vector<512x256xbf16>, vector<8x256xf32> -> vector<8x256xf32>
    %cst_29 = arith.constant dense<0.000000e+00> : vector<256xf32>
    %60 = vector.multi_reduction <add>, %59, %cst_29 [0] : vector<8x256xf32> to vector<256xf32>
    %61 = vector.shape_cast %60 : vector<256xf32> to vector<1x256xf32>
    %62 = arith.mulf %59, %59 : vector<8x256xf32>
    %cst_30 = arith.constant dense<0.000000e+00> : vector<256xf32>
    %63 = vector.multi_reduction <add>, %62, %cst_30 [0] : vector<8x256xf32> to vector<256xf32>
    %64 = vector.shape_cast %63 : vector<256xf32> to vector<1x256xf32>
    %cst_31 = arith.constant 1.250000e-01 : f32
    %65 = vector.broadcast %cst_31 : f32 to vector<1x256xf32>
    %66 = arith.mulf %61, %65 : vector<1x256xf32>
    %cst_32 = arith.constant 1.250000e-01 : f32
    %67 = vector.broadcast %cst_32 : f32 to vector<1x256xf32>
    %68 = arith.mulf %64, %67 : vector<1x256xf32>
    %69 = arith.mulf %66, %66 : vector<1x256xf32>
    %70 = arith.subf %68, %69 : vector<1x256xf32>
    %c0_33 = arith.constant 0 : index
    %c0_34 = arith.constant 0 : index
    %71 = vector.load %arg8[%c0_33, %c0_34] : memref<1x256xf32, #tpu.memory_space<vmem>>, vector<1x256xf32>
    %cst_35 = arith.constant 9.99999974E-6 : f32
    %72 = vector.broadcast %cst_35 : f32 to vector<1x256xf32>
    %73 = arith.addf %70, %72 : vector<1x256xf32>
    %74 = math.rsqrt %73 : vector<1x256xf32>
    %75 = arith.mulf %71, %74 : vector<1x256xf32>
    %c0_36 = arith.constant 0 : index
    %c0_37 = arith.constant 0 : index
    %76 = vector.load %arg9[%c0_36, %c0_37] : memref<1x256xf32, #tpu.memory_space<vmem>>, vector<1x256xf32>
    %77 = arith.mulf %66, %75 : vector<1x256xf32>
    %78 = arith.subf %76, %77 : vector<1x256xf32>
    %79 = vector.broadcast %75 : vector<1x256xf32> to vector<8x256xf32>
    %80 = arith.mulf %59, %79 : vector<8x256xf32>
    %81 = vector.broadcast %78 : vector<1x256xf32> to vector<8x256xf32>
    %82 = arith.addf %80, %81 : vector<8x256xf32>
    %cst_38 = arith.constant 0.000000e+00 : f32
    %83 = vector.broadcast %cst_38 : f32 to vector<8x256xf32>
    %84 = arith.maximumf %82, %83 : vector<8x256xf32>
    %85 = arith.truncf %84 : vector<8x256xf32> to vector<8x256xbf16>
    %c0_39 = arith.constant 0 : index
    %c0_40 = arith.constant 0 : index
    %86 = vector.load %arg10[%c0_39, %c0_40] : memref<256x128xbf16, #tpu.memory_space<vmem>>, vector<256x128xbf16>
    %cst_41 = arith.constant dense<0.000000e+00> : vector<8x128xf32>
    %87 = tpu.matmul %85, %86, %cst_41 {dimension_numbers = #tpu.dot_dimension_numbers<[1], [0], [0], [1], [0, 0, 1, 1], [], []>} : vector<8x256xbf16>, vector<256x128xbf16>, vector<8x128xf32> -> vector<8x128xf32>
    %cst_42 = arith.constant dense<0.000000e+00> : vector<128xf32>
    %88 = vector.multi_reduction <add>, %87, %cst_42 [0] : vector<8x128xf32> to vector<128xf32>
    %89 = vector.shape_cast %88 : vector<128xf32> to vector<1x128xf32>
    %90 = arith.mulf %87, %87 : vector<8x128xf32>
    %cst_43 = arith.constant dense<0.000000e+00> : vector<128xf32>
    %91 = vector.multi_reduction <add>, %90, %cst_43 [0] : vector<8x128xf32> to vector<128xf32>
    %92 = vector.shape_cast %91 : vector<128xf32> to vector<1x128xf32>
    %cst_44 = arith.constant 1.250000e-01 : f32
    %93 = vector.broadcast %cst_44 : f32 to vector<1x128xf32>
    %94 = arith.mulf %89, %93 : vector<1x128xf32>
    %cst_45 = arith.constant 1.250000e-01 : f32
    %95 = vector.broadcast %cst_45 : f32 to vector<1x128xf32>
    %96 = arith.mulf %92, %95 : vector<1x128xf32>
    %97 = arith.mulf %94, %94 : vector<1x128xf32>
    %98 = arith.subf %96, %97 : vector<1x128xf32>
    %c0_46 = arith.constant 0 : index
    %c0_47 = arith.constant 0 : index
    %99 = vector.load %arg11[%c0_46, %c0_47] : memref<1x128xf32, #tpu.memory_space<vmem>>, vector<1x128xf32>
    %cst_48 = arith.constant 9.99999974E-6 : f32
    %100 = vector.broadcast %cst_48 : f32 to vector<1x128xf32>
    %101 = arith.addf %98, %100 : vector<1x128xf32>
    %102 = math.rsqrt %101 : vector<1x128xf32>
    %103 = arith.mulf %99, %102 : vector<1x128xf32>
    %c0_49 = arith.constant 0 : index
    %c0_50 = arith.constant 0 : index
    %104 = vector.load %arg12[%c0_49, %c0_50] : memref<1x128xf32, #tpu.memory_space<vmem>>, vector<1x128xf32>
    %105 = arith.mulf %94, %103 : vector<1x128xf32>
    %106 = arith.subf %104, %105 : vector<1x128xf32>
    %107 = vector.broadcast %103 : vector<1x128xf32> to vector<8x128xf32>
    %108 = arith.mulf %87, %107 : vector<8x128xf32>
    %109 = vector.broadcast %106 : vector<1x128xf32> to vector<8x128xf32>
    %110 = arith.addf %108, %109 : vector<8x128xf32>
    %cst_51 = arith.constant 0.000000e+00 : f32
    %111 = vector.broadcast %cst_51 : f32 to vector<8x128xf32>
    %112 = arith.maximumf %110, %111 : vector<8x128xf32>
    %113 = arith.truncf %112 : vector<8x128xf32> to vector<8x128xbf16>
    %c0_52 = arith.constant 0 : index
    %c0_53 = arith.constant 0 : index
    %114 = vector.load %arg13[%c0_52, %c0_53] : memref<128x128xbf16, #tpu.memory_space<vmem>>, vector<128x128xbf16>
    %cst_54 = arith.constant dense<0.000000e+00> : vector<8x128xf32>
    %115 = tpu.matmul %113, %114, %cst_54 {dimension_numbers = #tpu.dot_dimension_numbers<[1], [0], [0], [1], [0, 0, 1, 1], [], []>} : vector<8x128xbf16>, vector<128x128xbf16>, vector<8x128xf32> -> vector<8x128xf32>
    %c0_55 = arith.constant 0 : index
    %c0_56 = arith.constant 0 : index
    %116 = vector.load %arg14[%c0_55, %c0_56] : memref<1x128xf32, #tpu.memory_space<vmem>>, vector<1x128xf32>
    %117 = vector.broadcast %116 : vector<1x128xf32> to vector<8x128xf32>
    %118 = arith.addf %115, %117 : vector<8x128xf32>
    %119 = math.tanh %118 : vector<8x128xf32>
    %cst_57 = arith.constant 3.970000e-01 : f32
    %120 = vector.broadcast %cst_57 : f32 to vector<8x128xf32>
    %121 = arith.mulf %120, %119 : vector<8x128xf32>
    %c0_58 = arith.constant 0 : index
    %c0_59 = arith.constant 0 : index
    %122 = vector.load %arg15[%c0_58, %c0_59] : memref<8x128xf32, #tpu.memory_space<vmem>>, vector<8x128xf32>
    tpu.vector_store %arg15[%c0_58, %c0_59], %121 {strides = array<i32>} : memref<8x128xf32, #tpu.memory_space<vmem>>, vector<8x128xf32>,
    return
  }
}

</mosaic_0001>

<llo_original>
// kernel: bcnet_forward.1
$region0: #{bcnet_forward.1}
  #allocation0 [shape = 'u32[]', space=smem, size = 0x4, offset = 0x4, fixed_abs, tag = 'smem constant byte address 0x4 - core index']
  #allocation1 [shape = 'u32[144,128]{1,0:T(1,128)}', space=vmem, size = 0x12000, scoped, tag = 'internal scratch']
  %s0 = inlined_call_operand.vmem [shape: f32[8,128], index: 0, kind: input, shape index: {}]
  %s1 = inlined_call_operand.hbm [shape: bf16[128,512], index: 1, kind: input, shape index: {}]
  %s2 = inlined_call_operand.vmem [shape: f32[1,512], index: 2, kind: input, shape index: {}]
  %s3 = inlined_call_operand.vmem [shape: f32[1,512], index: 3, kind: input, shape index: {}]
  %s4 = inlined_call_operand.hbm [shape: bf16[512,512], index: 4, kind: input, shape index: {}]
  %s5 = inlined_call_operand.vmem [shape: f32[1,512], index: 5, kind: input, shape index: {}]
  %s6 = inlined_call_operand.vmem [shape: f32[1,512], index: 6, kind: input, shape index: {}]
  %s7 = inlined_call_operand.hbm [shape: bf16[512,256], index: 7, kind: input, shape index: {}]
  %s8 = inlined_call_operand.vmem [shape: f32[1,256], index: 8, kind: input, shape index: {}]
  %s9 = inlined_call_operand.vmem [shape: f32[1,256], index: 9, kind: input, shape index: {}]
  %s10 = inlined_call_operand.hbm [shape: bf16[256,128], index: 10, kind: input, shape index: {}]
  %s11 = inlined_call_operand.vmem [shape: f32[1,128], index: 11, kind: input, shape index: {}]
  %s12 = inlined_call_operand.vmem [shape: f32[1,128], index: 12, kind: input, shape index: {}]
  %s13 = inlined_call_operand.hbm [shape: bf16[128,128], index: 13, kind: input, shape index: {}]
  %s14 = inlined_call_operand.vmem [shape: f32[1,128], index: 14, kind: input, shape index: {}]
  %s15 = inlined_call_operand.hbm [shape: f32[8,128], index: 15, kind: output, shape index: {}]
  %s16 = sld [smem:[#allocation0]]
  $region90: #{bcnet_forward.1} parent=0
    _
  %s18 = ssub.s32 1, %s16
  %s19 = scalar_select 0, %s18, %s16
  $region1: #{bcnet_forward.1} parent=0
    #allocation2 [shape = 'u8[131072]{0}', space=vmem, size = 0x20000, scoped, tag = 'input window, operand 1, single buffered']
    #allocation3 [shape = 's32[1]{0}', space=sflag, size = 0x4, scoped, tag = 'scoped memory for bcnet_forward.1']
    #allocation4 [shape = 's32[1]{0}', space=sflag, size = 0x4, scoped, tag = 'scoped memory for bcnet_forward.1']
    #allocation5 [shape = 'u8[524288]{0}', space=vmem, size = 0x80000, scoped, tag = 'input window, operand 4, single buffered']
    #allocation6 [shape = 's32[1]{0}', space=sflag, size = 0x4, scoped, tag = 'scoped memory for bcnet_forward.1']
    #allocation7 [shape = 'u8[262144]{0}', space=vmem, size = 0x40000, scoped, tag = 'input window, operand 7, single buffered']
    #allocation8 [shape = 'u8[65536]{0}', space=vmem, size = 0x10000, scoped, tag = 'input window, operand 10, single buffered']
    #allocation9 [shape = 's32[1]{0}', space=sflag, size = 0x4, scoped, tag = 'scoped memory for bcnet_forward.1']
    #allocation10 [shape = 'u8[32768]{0}', space=vmem, size = 0x8000, scoped, tag = 'input window, operand 13, single buffered']
    #allocation11 [shape = 'u8[4096]{0}', space=vmem, size = 0x1000, scoped, tag = 'output window, operand 0, single buffered']
    %20 = vsyncpa [#allocation3], 0
    %21 = vsyncpa [#allocation6], 0
    %22 = vsyncpa [#allocation9], 0
    %23 = vsyncpa [#allocation4], 0
    // Predicated region
    $region2: #{bcnet_forward.1} parent=1 // pred_check
      _
    $region3: #{bcnet_forward.1} parent=1 // pred_check_branch
      %25 = sbr.rel (0) target = $region5
    $region4: #{bcnet_forward.1} parent=1 // pred_region
      _
    $region5: #{bcnet_forward.1} parent=1 // pred_fallthru
      _
    // Predicated region
    $region6: #{bcnet_forward.1} parent=1 // pred_check
      _
    $region7: #{bcnet_forward.1} parent=1 // pred_check_branch
      %27 = sbr.rel (0) target = $region9
    $region8: #{bcnet_forward.1} parent=1 // pred_region
      %s29 = ssub.s32 4096, 4096
      %30 = vsyncadd [#allocation3], %s29
      %s31 = sshll.u32 [#allocation2], 4
      %s32 = int_to_ptr.vmem [resolvable:$true] %s31
      %37 = dma.hbm_to_vmem [thread:$0]  %s1, 4096, %s32, [#allocation3], 256, 256, 16
    $region9: #{bcnet_forward.1} parent=1 // pred_fallthru
      _
    // Predicated region
    $region10: #{bcnet_forward.1} parent=1 // pred_check
      _
    $region11: #{bcnet_forward.1} parent=1 // pred_check_branch
      %39 = sbr.rel (0) target = $region13
    $region12: #{bcnet_forward.1} parent=1 // pred_region
      _
    $region13: #{bcnet_forward.1} parent=1 // pred_fallthru
      _
    // Predicated region
    $region14: #{bcnet_forward.1} parent=1 // pred_check
      _
    $region15: #{bcnet_forward.1} parent=1 // pred_check_branch
      %41 = sbr.rel (0) target = $region17
    $region16: #{bcnet_forward.1} parent=1 // pred_region
      _
    $region17: #{bcnet_forward.1} parent=1 // pred_fallthru
      _
    // Predicated region
    $region18: #{bcnet_forward.1} parent=1 // pred_check
      _
    $region19: #{bcnet_forward.1} parent=1 // pred_check_branch
      %43 = sbr.rel (0) target = $region21
    $region20: #{bcnet_forward.1} parent=1 // pred_region
      %s45 = ssub.s32 16384, 16384
      %46 = vsyncadd [#allocation6], %s45
      %s47 = sshll.u32 [#allocation5], 4
      %s48 = int_to_ptr.vmem [resolvable:$true] %s47
      %53 = dma.hbm_to_vmem [thread:$0]  %s4, 16384, %s48, [#allocation6], 256, 256, 16
    $region21: #{bcnet_forward.1} parent=1 // pred_fallthru
      _
    // Predicated region
    $region22: #{bcnet_forward.1} parent=1 // pred_check
      _
    $region23: #{bcnet_forward.1} parent=1 // pred_check_branch
      %55 = sbr.rel (0) target = $region25
    $region24: #{bcnet_forward.1} parent=1 // pred_region
      _
    $region25: #{bcnet_forward.1} parent=1 // pred_fallthru
      _
    // Predicated region
    $region26: #{bcnet_forward.1} parent=1 // pred_check
      _
    $region27: #{bcnet_forward.1} parent=1 // pred_check_branch
      %57 = sbr.rel (0) target = $region29
    $region28: #{bcnet_forward.1} parent=1 // pred_region
      _
    $region29: #{bcnet_forward.1} parent=1 // pred_fallthru
      _
    // Predicated region
    $region30: #{bcnet_forward.1} parent=1 // pred_check
      _
    $region31: #{bcnet_forward.1} parent=1 // pred_check_branch
      %59 = sbr.rel (0) target = $region33
    $region32: #{bcnet_forward.1} parent=1 // pred_region
      %s61 = ssub.s32 8192, 8192
      %62 = vsyncadd [#allocation6], %s61
      %s63 = sshll.u32 [#allocation7], 4
      %s64 = int_to_ptr.vmem [resolvable:$true] %s63
      %69 = dma.hbm_to_vmem [thread:$0]  %s7, 8192, %s64, [#allocation6], 128, 128, 8
    $region33: #{bcnet_forward.1} parent=1 // pred_fallthru
      _
    // Predicated region
    $region34: #{bcnet_forward.1} parent=1 // pred_check
      _
    $region35: #{bcnet_forward.1} parent=1 // pred_check_branch
      %71 = sbr.rel (0) target = $region37
    $region36: #{bcnet_forward.1} parent=1 // pred_region
      _
    $region37: #{bcnet_forward.1} parent=1 // pred_fallthru
      _
    // Predicated region
    $region38: #{bcnet_forward.1} parent=1 // pred_check
      _
    $region39: #{bcnet_forward.1} parent=1 // pred_check_branch
      %73 = sbr.rel (0) target = $region41
    $region40: #{bcnet_forward.1} parent=1 // pred_region
      _
    $region41: #{bcnet_forward.1} parent=1 // pred_fallthru
      _
    // Predicated region
    $region42: #{bcnet_forward.1} parent=1 // pred_check
      _
    $region43: #{bcnet_forward.1} parent=1 // pred_check_branch
      %75 = sbr.rel (0) target = $region45
    $region44: #{bcnet_forward.1} parent=1 // pred_region
      %s77 = ssub.s32 2048, 2048
      %78 = vsyncadd [#allocation9], %s77
      %s79 = sshll.u32 [#allocation8], 4
      %s80 = int_to_ptr.vmem [resolvable:$true] %s79
      %85 = dma.hbm_to_vmem [thread:$0]  %s10, 2048, %s80, [#allocation9], 64, 64, 4
    $region45: #{bcnet_forward.1} parent=1 // pred_fallthru
      _
    // Predicated region
    $region46: #{bcnet_forward.1} parent=1 // pred_check
      _
    $region47: #{bcnet_forward.1} parent=1 // pred_check_branch
      %87 = sbr.rel (0) target = $region49
    $region48: #{bcnet_forward.1} parent=1 // pred_region
      _
    $region49: #{bcnet_forward.1} parent=1 // pred_fallthru
      _
    // Predicated region
    $region50: #{bcnet_forward.1} parent=1 // pred_check
      _
    $region51: #{bcnet_forward.1} parent=1 // pred_check_branch
      %89 = sbr.rel (0) target = $region53
    $region52: #{bcnet_forward.1} parent=1 // pred_region
      _
    $region53: #{bcnet_forward.1} parent=1 // pred_fallthru
      _
    // Predicated region
    $region54: #{bcnet_forward.1} parent=1 // pred_check
      _
    $region55: #{bcnet_forward.1} parent=1 // pred_check_branch
      %91 = sbr.rel (0) target = $region57
    $region56: #{bcnet_forward.1} parent=1 // pred_region
      %s93 = ssub.s32 1024, 1024
      %94 = vsyncadd [#allocation9], %s93
      %s95 = sshll.u32 [#allocation10], 4
      %s96 = int_to_ptr.vmem [resolvable:$true] %s95
      %101 = dma.hbm_to_vmem [thread:$0]  %s13, 1024, %s96, [#allocation9], 64, 64, 4
    $region57: #{bcnet_forward.1} parent=1 // pred_fallthru
      _
    // Predicated region
    $region58: #{bcnet_forward.1} parent=1 // pred_check
      _
    $region59: #{bcnet_forward.1} parent=1 // pred_check_branch
      %103 = sbr.rel (0) target = $region61
    $region60: #{bcnet_forward.1} parent=1 // pred_region
      _
    $region61: #{bcnet_forward.1} parent=1 // pred_fallthru
      _
    // Predicated region
    $region62: #{bcnet_forward.1} parent=1 // pred_check
      _
    $region63: #{bcnet_forward.1} parent=1 // pred_check_branch
      %105 = sbr.rel (0) target = $region65
    $region64: #{bcnet_forward.1} parent=1 // pred_region
      %106 = dma.done [#allocation3], 4096
    $region65: #{bcnet_forward.1} parent=1 // pred_fallthru
      _
    // Predicated region
    $region66: #{bcnet_forward.1} parent=1 // pred_check
      _
    $region67: #{bcnet_forward.1} parent=1 // pred_check_branch
      %108 = sbr.rel (0) target = $region69
    $region68: #{bcnet_forward.1} parent=1 // pred_region
      %109 = dma.done [#allocation6], 16384
    $region69: #{bcnet_forward.1} parent=1 // pred_fallthru
      _
    // Predicated region
    $region70: #{bcnet_forward.1} parent=1 // pred_check
      _
    $region71: #{bcnet_forward.1} parent=1 // pred_check_branch
      %111 = sbr.rel (0) target = $region73
    $region72: #{bcnet_forward.1} parent=1 // pred_region
      %112 = dma.done [#allocation6], 8192
    $region73: #{bcnet_forward.1} parent=1 // pred_fallthru
      _
    // Predicated region
    $region74: #{bcnet_forward.1} parent=1 // pred_check
      _
    $region75: #{bcnet_forward.1} parent=1 // pred_check_branch
      %114 = sbr.rel (0) target = $region77
    $region76: #{bcnet_forward.1} parent=1 // pred_region
      %115 = dma.done [#allocation9], 2048
    $region77: #{bcnet_forward.1} parent=1 // pred_fallthru
      _
    // Predicated region
    $region78: #{bcnet_forward.1} parent=1 // pred_check
      _
    $region79: #{bcnet_forward.1} parent=1 // pred_check_branch
      %117 = sbr.rel (0) target = $region81
    $region80: #{bcnet_forward.1} parent=1 // pred_region
      %118 = dma.done [#allocation9], 1024
    $region81: #{bcnet_forward.1} parent=1 // pred_fallthru
      _
    %v120 = vld [vmem:[%s0] sm:$0xff]
    %v121 = vpack.c.bf16 %v120, %v120
    %v122 = vld [vmem:[#allocation2] sm:$0xff]
    %v123 = vld [vmem:[#allocation2 + $0x8] sm:$0xff]
    %v124 = vld [vmem:[#allocation2 + $0x10] sm:$0xff]
    %v125 = vld [vmem:[#allocation2 + $0x18] sm:$0xff]
    %v126 = vld [vmem:[#allocation2 + $0x20] sm:$0xff]
    %v127 = vld [vmem:[#allocation2 + $0x28] sm:$0xff]
    %v128 = vld [vmem:[#allocation2 + $0x30] sm:$0xff]
    %v129 = vld [vmem:[#allocation2 + $0x38] sm:$0xff]
    %v130 = vld [vmem:[#allocation2 + $0x40] sm:$0xff]
    %v131 = vld [vmem:[#allocation2 + $0x48] sm:$0xff]
    %v132 = vld [vmem:[#allocation2 + $0x50] sm:$0xff]
    %v133 = vld [vmem:[#allocation2 + $0x58] sm:$0xff]
    %v134 = vld [vmem:[#allocation2 + $0x60] sm:$0xff]
    %v135 = vld [vmem:[#allocation2 + $0x68] sm:$0xff]
    %v136 = vld [vmem:[#allocation2 + $0x70] sm:$0xff]
    %v137 = vld [vmem:[#allocation2 + $0x78] sm:$0xff]
    %v138 = vld [vmem:[#allocation2 + $0x80] sm:$0xff]
    %v139 = vld [vmem:[#allocation2 + $0x88] sm:$0xff]
    %v140 = vld [vmem:[#allocation2 + $0x90] sm:$0xff]
    %v141 = vld [vmem:[#allocation2 + $0x98] sm:$0xff]
    %v142 = vld [vmem:[#allocation2 + $0xa0] sm:$0xff]
    %v143 = vld [vmem:[#allocation2 + $0xa8] sm:$0xff]
    %v144 = vld [vmem:[#allocation2 + $0xb0] sm:$0xff]
    %v145 = vld [vmem:[#allocation2 + $0xb8] sm:$0xff]
    %v146 = vld [vmem:[#allocation2 + $0xc0] sm:$0xff]
    %v147 = vld [vmem:[#allocation2 + $0xc8] sm:$0xff]
    %v148 = vld [vmem:[#allocation2 + $0xd0] sm:$0xff]
    %v149 = vld [vmem:[#allocation2 + $0xd8] sm:$0xff]
    %v150 = vld [vmem:[#allocation2 + $0xe0] sm:$0xff]
    %v151 = vld [vmem:[#allocation2 + $0xe8] sm:$0xff]
    %v152 = vld [vmem:[#allocation2 + $0xf0] sm:$0xff]
    %v153 = vld [vmem:[#allocation2 + $0xf8] sm:$0xff]
    %v186 = vunpack.c.l.b16 %v122
    %v187 = vunpack.c.h.b16 %v122
    %v188 = vunpack.c.l.b16 %v123
    %v189 = vunpack.c.h.b16 %v123
    %v190 = vunpack.c.l.b16 %v124
    %v191 = vunpack.c.h.b16 %v124
    %v192 = vunpack.c.l.b16 %v125
    %v193 = vunpack.c.h.b16 %v125
    %v194 = vunpack.c.l.b16 %v126
    %v195 = vunpack.c.h.b16 %v126
    %v196 = vunpack.c.l.b16 %v127
    %v197 = vunpack.c.h.b16 %v127
    %v198 = vunpack.c.l.b16 %v128
    %v199 = vunpack.c.h.b16 %v128
    %v200 = vunpack.c.l.b16 %v129
    %v201 = vunpack.c.h.b16 %v129
    %v202 = vunpack.c.l.b16 %v130
    %v203 = vunpack.c.h.b16 %v130
    %v204 = vunpack.c.l.b16 %v131
    %v205 = vunpack.c.h.b16 %v131
    %v206 = vunpack.c.l.b16 %v132
    %v207 = vunpack.c.h.b16 %v132
    %v208 = vunpack.c.l.b16 %v133
    %v209 = vunpack.c.h.b16 %v133
    %v210 = vunpack.c.l.b16 %v134
    %v211 = vunpack.c.h.b16 %v134
    %v212 = vunpack.c.l.b16 %v135
    %v213 = vunpack.c.h.b16 %v135
    %v214 = vunpack.c.l.b16 %v136
    %v215 = vunpack.c.h.b16 %v136
    %v216 = vunpack.c.l.b16 %v137
    %v217 = vunpack.c.h.b16 %v137
    %v218 = vunpack.c.l.b16 %v138
    %v219 = vunpack.c.h.b16 %v138
    %v220 = vunpack.c.l.b16 %v139
    %v221 = vunpack.c.h.b16 %v139
    %v222 = vunpack.c.l.b16 %v140
    %v223 = vunpack.c.h.b16 %v140
    %v224 = vunpack.c.l.b16 %v141
    %v225 = vunpack.c.h.b16 %v141
    %v226 = vunpack.c.l.b16 %v142
    %v227 = vunpack.c.h.b16 %v142
    %v228 = vunpack.c.l.b16 %v143
    %v229 = vunpack.c.h.b16 %v143
    %v230 = vunpack.c.l.b16 %v144
    %v231 = vunpack.c.h.b16 %v144
    %v232 = vunpack.c.l.b16 %v145
    %v233 = vunpack.c.h.b16 %v145
    %v234 = vunpack.c.l.b16 %v146
    %v235 = vunpack.c.h.b16 %v146
    %v236 = vunpack.c.l.b16 %v147
    %v237 = vunpack.c.h.b16 %v147
    %v238 = vunpack.c.l.b16 %v148
    %v239 = vunpack.c.h.b16 %v148
    %v240 = vunpack.c.l.b16 %v149
    %v241 = vunpack.c.h.b16 %v149
    %v242 = vunpack.c.l.b16 %v150
    %v243 = vunpack.c.h.b16 %v150
    %v244 = vunpack.c.l.b16 %v151
    %v245 = vunpack.c.h.b16 %v151
    %v246 = vunpack.c.l.b16 %v152
    %v247 = vunpack.c.h.b16 %v152
    %v248 = vunpack.c.l.b16 %v153
    %v249 = vunpack.c.h.b16 %v153
    %v250 = vpack.c.b16 %v190, %v186
    %v251 = vpack.c.b16 %v191, %v187
    %v252 = vpack.c.b16 %v192, %v188
    %v253 = vpack.c.b16 %v193, %v189
    %v254 = vpack.c.b16 %v198, %v194
    %v255 = vpack.c.b16 %v199, %v195
    %v256 = vpack.c.b16 %v200, %v196
    %v257 = vpack.c.b16 %v201, %v197
    %v258 = vpack.c.b16 %v206, %v202
    %v259 = vpack.c.b16 %v207, %v203
    %v260 = vpack.c.b16 %v208, %v204
    %v261 = vpack.c.b16 %v209, %v205
    %v262 = vpack.c.b16 %v214, %v210
    %v263 = vpack.c.b16 %v215, %v211
    %v264 = vpack.c.b16 %v216, %v212
    %v265 = vpack.c.b16 %v217, %v213
    %v266 = vpack.c.b16 %v222, %v218
    %v267 = vpack.c.b16 %v223, %v219
    %v268 = vpack.c.b16 %v224, %v220
    %v269 = vpack.c.b16 %v225, %v221
    %v270 = vpack.c.b16 %v230, %v226
    %v271 = vpack.c.b16 %v231, %v227
    %v272 = vpack.c.b16 %v232, %v228
    %v273 = vpack.c.b16 %v233, %v229
    %v274 = vpack.c.b16 %v238, %v234
    %v275 = vpack.c.b16 %v239, %v235
    %v276 = vpack.c.b16 %v240, %v236
    %v277 = vpack.c.b16 %v241, %v237
    %v278 = vpack.c.b16 %v246, %v242
    %v279 = vpack.c.b16 %v247, %v243
    %v280 = vpack.c.b16 %v248, %v244
    %v281 = vpack.c.b16 %v249, %v245
    %314 = vmatprep.subr.bf16.mxu0 %v279
    %315 = vmatpush1.bf16.msra.mxu0 %v278
    %316 = vmatprep.subr.bf16.mxu0 %v275
    %317 = vmatpush1.bf16.msra.mxu0 %v274
    %318 = vmatprep.subr.bf16.mxu0 %v271
    %319 = vmatpush1.bf16.msra.mxu0 %v270
    %320 = vmatprep.subr.bf16.mxu0 %v267
    %321 = vmatpush1.bf16.msra.mxu0 %v266
    %322 = vmatprep.subr.bf16.mxu0 %v263
    %323 = vmatpush1.bf16.msra.mxu0 %v262
    %324 = vmatprep.subr.bf16.mxu0 %v259
    %325 = vmatpush1.bf16.msra.mxu0 %v258
    %326 = vmatprep.subr.bf16.mxu0 %v255
    %327 = vmatpush1.bf16.msra.mxu0 %v254
    %328 = vmatprep.subr.bf16.mxu0 %v251
    %329 = vmatpush1.bf16.msra.mxu0 %v250
    %330 = vmatprep.subr.bf16.mxu0 0
    %331 = vmatpush2.bf16.msra.mxu0 0
    %332 = vmatprep.subr.bf16.mxu0 0
    %333 = vmatpush2.bf16.msra.mxu0 0
    %334 = vmatprep.subr.bf16.mxu0 0
    %335 = vmatpush2.bf16.msra.mxu0 0
    %336 = vmatprep.subr.bf16.mxu0 0
    %337 = vmatpush2.bf16.msra.mxu0 0
    %338 = vmatprep.subr.bf16.mxu0 0
    %339 = vmatpush2.bf16.msra.mxu0 0
    %340 = vmatprep.subr.bf16.mxu0 0
    %341 = vmatpush2.bf16.msra.mxu0 0
    %342 = vmatprep.subr.bf16.mxu0 0
    %343 = vmatpush2.bf16.msra.mxu0 0
    %344 = vmatprep.subr.bf16.mxu0 0
    %345 = vmatpush2.bf16.msra.mxu0 0
    %346 = vmatprep.mubr.bf16.mxu0 0
    %347 = vmatmul.mubr.bf16.gmra.mxu0 %v121
    %v348 = vpop.f32.mrf.mxu0
    %v349 = vadd.f32 0.0, %v348
    %v350 = vpop.f32.mrf.mxu0
    %v351 = vadd.f32 0.0, %v350
    %v352 = vpop.f32.mrf.mxu0
    %v353 = vpop.f32.mrf.mxu0
    %354 = vdwg.mxu0
    %355 = vmatprep.subr.bf16.mxu0 %v281
    %356 = vmatpush1.bf16.msra.mxu0 %v280
    %357 = vmatprep.subr.bf16.mxu0 %v277
    %358 = vmatpush1.bf16.msra.mxu0 %v276
    %359 = vmatprep.subr.bf16.mxu0 %v273
    %360 = vmatpush1.bf16.msra.mxu0 %v272
    %361 = vmatprep.subr.bf16.mxu0 %v269
    %362 = vmatpush1.bf16.msra.mxu0 %v268
    %363 = vmatprep.subr.bf16.mxu0 %v265
    %364 = vmatpush1.bf16.msra.mxu0 %v264
    %365 = vmatprep.subr.bf16.mxu0 %v261
    %366 = vmatpush1.bf16.msra.mxu0 %v260
    %367 = vmatprep.subr.bf16.mxu0 %v257
    %368 = vmatpush1.bf16.msra.mxu0 %v256
    %369 = vmatprep.subr.bf16.mxu0 %v253
    %370 = vmatpush1.bf16.msra.mxu0 %v252
    %371 = vmatprep.subr.bf16.mxu0 0
    %372 = vmatpush2.bf16.msra.mxu0 0
    %373 = vmatprep.subr.bf16.mxu0 0
    %374 = vmatpush2.bf16.msra.mxu0 0
    %375 = vmatprep.subr.bf16.mxu0 0
    %376 = vmatpush2.bf16.msra.mxu0 0
    %377 = vmatprep.subr.bf16.mxu0 0
    %378 = vmatpush2.bf16.msra.mxu0 0
    %379 = vmatprep.subr.bf16.mxu0 0
    %380 = vmatpush2.bf16.msra.mxu0 0
    %381 = vmatprep.subr.bf16.mxu0 0
    %382 = vmatpush2.bf16.msra.mxu0 0
    %383 = vmatprep.subr.bf16.mxu0 0
    %384 = vmatpush2.bf16.msra.mxu0 0
    %385 = vmatprep.subr.bf16.mxu0 0
    %386 = vmatpush2.bf16.msra.mxu0 0
    %387 = vmatprep.mubr.bf16.mxu0 0
    %388 = vmatmul.mubr.bf16.gmra.mxu0 %v121
    %v389 = vpop.f32.mrf.mxu0
    %v390 = vadd.f32 0.0, %v389
    %v391 = vpop.f32.mrf.mxu0
    %v392 = vadd.f32 0.0, %v391
    %v393 = vpop.f32.mrf.mxu0
    %v394 = vpop.f32.mrf.mxu0
    %395 = vdwg.mxu0
    %v396 = vrot.slane %v349, 4
    %v397 = vadd.f32 %v349, %v396
    %v398 = vrot.slane %v397, 2
    %v399 = vadd.f32 %v397, %v398
    %v400 = vrot.slane %v399, 1
    %v401 = vadd.f32 %v399, %v400
    %v402 = vrot.slane %v351, 4
    %v403 = vadd.f32 %v351, %v402
    %v404 = vrot.slane %v403, 2
    %v405 = vadd.f32 %v403, %v404
    %v406 = vrot.slane %v405, 1
    %v407 = vadd.f32 %v405, %v406
    %v408 = vrot.slane %v390, 4
    %v409 = vadd.f32 %v390, %v408
    %v410 = vrot.slane %v409, 2
    %v411 = vadd.f32 %v409, %v410
    %v412 = vrot.slane %v411, 1
    %v413 = vadd.f32 %v411, %v412
    %v414 = vrot.slane %v392, 4
    %v415 = vadd.f32 %v392, %v414
    %v416 = vrot.slane %v415, 2
    %v417 = vadd.f32 %v415, %v416
    %v418 = vrot.slane %v417, 1
    %v419 = vadd.f32 %v417, %v418
    %v420 = vmul.f32 %v349, %v349
    %v421 = vmul.f32 %v351, %v351
    %v422 = vmul.f32 %v390, %v390
    %v423 = vmul.f32 %v392, %v392
    %v424 = vrot.slane %v420, 4
    %v425 = vadd.f32 %v420, %v424
    %v426 = vrot.slane %v425, 2
    %v427 = vadd.f32 %v425, %v426
    %v428 = vrot.slane %v427, 1
    %v429 = vadd.f32 %v427, %v428
    %v430 = vrot.slane %v421, 4
    %v431 = vadd.f32 %v421, %v430
    %v432 = vrot.slane %v431, 2
    %v433 = vadd.f32 %v431, %v432
    %v434 = vrot.slane %v433, 1
    %v435 = vadd.f32 %v433, %v434
    %v436 = vrot.slane %v422, 4
    %v437 = vadd.f32 %v422, %v436
    %v438 = vrot.slane %v437, 2
    %v439 = vadd.f32 %v437, %v438
    %v440 = vrot.slane %v439, 1
    %v441 = vadd.f32 %v439, %v440
    %v442 = vrot.slane %v423, 4
    %v443 = vadd.f32 %v423, %v442
    %v444 = vrot.slane %v443, 2
    %v445 = vadd.f32 %v443, %v444
    %v446 = vrot.slane %v445, 1
    %v447 = vadd.f32 %v445, %v446
    %v448 = vmul.f32 %v401, 0.125
    %v449 = vmul.f32 %v407, 0.125
    %v450 = vmul.f32 %v413, 0.125
    %v451 = vmul.f32 %v419, 0.125
    %v452 = vmul.f32 %v429, 0.125
    %v453 = vmul.f32 %v435, 0.125
    %v454 = vmul.f32 %v441, 0.125
    %v455 = vmul.f32 %v447, 0.125
    %v456 = vmul.f32 %v448, %v448
    %v457 = vmul.f32 %v449, %v449
    %v458 = vmul.f32 %v450, %v450
    %v459 = vmul.f32 %v451, %v451
    %v460 = vsub.f32 %v452, %v456
    %v461 = vsub.f32 %v453, %v457
    %v462 = vsub.f32 %v454, %v458
    %v463 = vsub.f32 %v455, %v459
    %v464 = vld [vmem:[%s2] sm:$0xf]
    %v465 = vadd.f32 %v460, 1e-05
    %v466 = vadd.f32 %v461, 1e-05
    %v467 = vadd.f32 %v462, 1e-05
    %v468 = vadd.f32 %v463, 1e-05
    %v469 = vrsqrt.pop %v465
    %v470 = vrsqrt.pop %v466
    %v471 = vrsqrt.pop %v467
    %v472 = vrsqrt.pop %v468
    %v477 = vcombine.low %v469, %v470
    %v478 = vcombine.low %v471, %v472
    %v480 = vunpack.c.l.s4 1966171168
    %v481 = vunpack.c.0.s8 %v480
    %v482 = vlaneseq
    %v483 = vshrl.u32 %v482, 7
    %v484 = vsub.s32 %v481, %v483
    %v485 = vrot.slane %v477, %v484
    %v487 = vunpack.c.l.s4 1966171168
    %v488 = vunpack.c.0.s8 %v487
    %v489 = vlaneseq
    %v490 = vshrl.u32 %v489, 7
    %v491 = vsub.s32 %v488, %v490
    %v492 = vrot.slane %v478, %v491
    %v493 = vcombine.low %v485, %v492
    %v495 = vunpack.c.l.s4 1966171168
    %v496 = vunpack.c.0.s8 %v495
    %v497 = vlaneseq
    %v498 = vshrl.u32 %v497, 7
    %v499 = vsub.s32 %v496, %v498
    %v500 = vrot.slane %v493, %v499
    %v502 = vmul.f32 %v464, %v500
    %v503 = vld [vmem:[%s3] sm:$0xf]
    %v505 = vlaneseq
    %v506 = vshrl.u32 %v505, 7
    %v507 = vsub.s32 0, %v506
    %v508 = vrot.slane %v502, %v507
    %v509 = vlaneseq
    %v510 = vshrl.u32 %v509, 7
    %v511 = vsub.s32 1, %v510
    %v512 = vrot.slane %v502, %v511
    %v513 = vlaneseq
    %v514 = vshrl.u32 %v513, 7
    %v515 = vsub.s32 2, %v514
    %v516 = vrot.slane %v502, %v515
    %v517 = vlaneseq
    %v518 = vshrl.u32 %v517, 7
    %v519 = vsub.s32 3, %v518
    %v520 = vrot.slane %v502, %v519
    %v525 = vmul.f32 %v448, %v508
    %v526 = vmul.f32 %v449, %v512
    %v527 = vmul.f32 %v450, %v516
    %v528 = vmul.f32 %v451, %v520
    %v533 = vcombine.low %v525, %v526
    %v534 = vcombine.low %v527, %v528
    %v536 = vunpack.c.l.s4 1966171168
    %v537 = vunpack.c.0.s8 %v536
    %v538 = vlaneseq
    %v539 = vshrl.u32 %v538, 7
    %v540 = vsub.s32 %v537, %v539
    %v541 = vrot.slane %v533, %v540
    %v543 = vunpack.c.l.s4 1966171168
    %v544 = vunpack.c.0.s8 %v543
    %v545 = vlaneseq
    %v546 = vshrl.u32 %v545, 7
    %v547 = vsub.s32 %v544, %v546
    %v548 = vrot.slane %v534, %v547
    %v549 = vcombine.low %v541, %v548
    %v551 = vunpack.c.l.s4 1966171168
    %v552 = vunpack.c.0.s8 %v551
    %v553 = vlaneseq
    %v554 = vshrl.u32 %v553, 7
    %v555 = vsub.s32 %v552, %v554
    %v556 = vrot.slane %v549, %v555
    %v558 = vsub.f32 %v503, %v556
    %v559 = vmul.f32 %v349, %v508
    %v560 = vmul.f32 %v351, %v512
    %v561 = vmul.f32 %v390, %v516
    %v562 = vmul.f32 %v392, %v520
    %v564 = vlaneseq
    %v565 = vshrl.u32 %v564, 7
    %v566 = vsub.s32 0, %v565
    %v567 = vrot.slane %v558, %v566
    %v568 = vlaneseq
    %v569 = vshrl.u32 %v568, 7
    %v570 = vsub.s32 1, %v569
    %v571 = vrot.slane %v558, %v570
    %v572 = vlaneseq
    %v573 = vshrl.u32 %v572, 7
    %v574 = vsub.s32 2, %v573
    %v575 = vrot.slane %v558, %v574
    %v576 = vlaneseq
    %v577 = vshrl.u32 %v576, 7
    %v578 = vsub.s32 3, %v577
    %v579 = vrot.slane %v558, %v578
    %v584 = vadd.f32 %v559, %v567
    %v585 = vadd.f32 %v560, %v571
    %v586 = vadd.f32 %v561, %v575
    %v587 = vadd.f32 %v562, %v579
    %v588 = vmax.f32 %v584, 0.0
    %v589 = vmax.f32 %v585, 0.0
    %v590 = vmax.f32 %v586, 0.0
    %v591 = vmax.f32 %v587, 0.0
    %v592 = vpack.c.bf16 %v588, %v588
    %v593 = vpack.c.bf16 %v589, %v589
    %v594 = vpack.c.bf16 %v590, %v590
    %v595 = vpack.c.bf16 %v591, %v591
    %v596 = vld [vmem:[#allocation5] sm:$0xff]
    %v597 = vld [vmem:[#allocation5 + $0x8] sm:$0xff]
    %v598 = vld [vmem:[#allocation5 + $0x10] sm:$0xff]
    %v599 = vld [vmem:[#allocation5 + $0x18] sm:$0xff]
    %v600 = vld [vmem:[#allocation5 + $0x20] sm:$0xff]
    %v601 = vld [vmem:[#allocation5 + $0x28] sm:$0xff]
    %v602 = vld [vmem:[#allocation5 + $0x30] sm:$0xff]
    %v603 = vld [vmem:[#allocation5 + $0x38] sm:$0xff]
    %v604 = vld [vmem:[#allocation5 + $0x40] sm:$0xff]
    %v605 = vld [vmem:[#allocation5 + $0x48] sm:$0xff]
    %v606 = vld [vmem:[#allocation5 + $0x50] sm:$0xff]
    %v607 = vld [vmem:[#allocation5 + $0x58] sm:$0xff]
    %v608 = vld [vmem:[#allocation5 + $0x60] sm:$0xff]
    %v609 = vld [vmem:[#allocation5 + $0x68] sm:$0xff]
    %v610 = vld [vmem:[#allocation5 + $0x70] sm:$0xff]
    %v611 = vld [vmem:[#allocation5 + $0x78] sm:$0xff]
    %v612 = vld [vmem:[#allocation5 + $0x80] sm:$0xff]
    %v613 = vld [vmem:[#allocation5 + $0x88] sm:$0xff]
    %v614 = vld [vmem:[#allocation5 + $0x90] sm:$0xff]
    %v615 = vld [vmem:[#allocation5 + $0x98] sm:$0xff]
    %v616 = vld [vmem:[#allocation5 + $0xa0] sm:$0xff]
    %v617 = vld [vmem:[#allocation5 + $0xa8] sm:$0xff]
    %v618 = vld [vmem:[#allocation5 + $0xb0] sm:$0xff]
    %v619 = vld [vmem:[#allocation5 + $0xb8] sm:$0xff]
    %v620 = vld [vmem:[#allocation5 + $0xc0] sm:$0xff]
    %v621 = vld [vmem:[#allocation5 + $0xc8] sm:$0xff]
    %v622 = vld [vmem:[#allocation5 + $0xd0] sm:$0xff]
    %v623 = vld [vmem:[#allocation5 + $0xd8] sm:$0xff]
    %v624 = vld [vmem:[#allocation5 + $0xe0] sm:$0xff]
    %v625 = vld [vmem:[#allocation5 + $0xe8] sm:$0xff]
    %v626 = vld [vmem:[#allocation5 + $0xf0] sm:$0xff]
    %v627 = vld [vmem:[#allocation5 + $0xf8] sm:$0xff]
    %v628 = vld [vmem:[#allocation5 + $0x100] sm:$0xff]
    %v629 = vld [vmem:[#allocation5 + $0x108] sm:$0xff]
    %v630 = vld [vmem:[#allocation5 + $0x110] sm:$0xff]
    %v631 = vld [vmem:[#allocation5 + $0x118] sm:$0xff]
    %v632 = vld [vmem:[#allocation5 + $0x120] sm:$0xff]
    %v633 = vld [vmem:[#allocation5 + $0x128] sm:$0xff]
    %v634 = vld [vmem:[#allocation5 + $0x130] sm:$0xff]
    %v635 = vld [vmem:[#allocation5 + $0x138] sm:$0xff]
    %v636 = vld [vmem:[#allocation5 + $0x140] sm:$0xff]
    %v637 = vld [vmem:[#allocation5 + $0x148] sm:$0xff]
    %v638 = vld [vmem:[#allocation5 + $0x150] sm:$0xff]
    %v639 = vld [vmem:[#allocation5 + $0x158] sm:$0xff]
    %v640 = vld [vmem:[#allocation5 + $0x160] sm:$0xff]
    %v641 = vld [vmem:[#allocation5 + $0x168] sm:$0xff]
    %v642 = vld [vmem:[#allocation5 + $0x170] sm:$0xff]
    %v643 = vld [vmem:[#allocation5 + $0x178] sm:$0xff]
    %v644 = vld [vmem:[#allocation5 + $0x180] sm:$0xff]
    %v645 = vld [vmem:[#allocation5 + $0x188] sm:$0xff]
    %v646 = vld [vmem:[#allocation5 + $0x190] sm:$0xff]
    %v647 = vld [vmem:[#allocation5 + $0x198] sm:$0xff]
    %v648 = vld [vmem:[#allocation5 + $0x1a0] sm:$0xff]
    %v649 = vld [vmem:[#allocation5 + $0x1a8] sm:$0xff]
    %v650 = vld [vmem:[#allocation5 + $0x1b0] sm:$0xff]
    %v651 = vld [vmem:[#allocation5 + $0x1b8] sm:$0xff]
    %v652 = vld [vmem:[#allocation5 + $0x1c0] sm:$0xff]
    %v653 = vld [vmem:[#allocation5 + $0x1c8] sm:$0xff]
    %v654 = vld [vmem:[#allocation5 + $0x1d0] sm:$0xff]
    %v655 = vld [vmem:[#allocation5 + $0x1d8] sm:$0xff]
    %v656 = vld [vmem:[#allocation5 + $0x1e0] sm:$0xff]
    %v657 = vld [vmem:[#allocation5 + $0x1e8] sm:$0xff]
    %v658 = vld [vmem:[#allocation5 + $0x1f0] sm:$0xff]
    %v659 = vld [vmem:[#allocation5 + $0x1f8] sm:$0xff]
    %v660 = vld [vmem:[#allocation5 + $0x200] sm:$0xff]
    %v661 = vld [vmem:[#allocation5 + $0x208] sm:$0xff]
    %v662 = vld [vmem:[#allocation5 + $0x210] sm:$0xff]
    %v663 = vld [vmem:[#allocation5 + $0x218] sm:$0xff]
    %v664 = vld [vmem:[#allocation5 + $0x220] sm:$0xff]
    %v665 = vld [vmem:[#allocation5 + $0x228] sm:$0xff]
    %v666 = vld [vmem:[#allocation5 + $0x230] sm:$0xff]
    %v667 = vld [vmem:[#allocation5 + $0x238] sm:$0xff]
    %v668 = vld [vmem:[#allocation5 + $0x240] sm:$0xff]
    %v669 = vld [vmem:[#allocation5 + $0x248] sm:$0xff]
    %v670 = vld [vmem:[#allocation5 + $0x250] sm:$0xff]
    %v671 = vld [vmem:[#allocation5 + $0x258] sm:$0xff]
    %v672 = vld [vmem:[#allocation5 + $0x260] sm:$0xff]
    %v673 = vld [vmem:[#allocation5 + $0x268] sm:$0xff]
    %v674 = vld [vmem:[#allocation5 + $0x270] sm:$0xff]
    %v675 = vld [vmem:[#allocation5 + $0x278] sm:$0xff]
    %v676 = vld [vmem:[#allocation5 + $0x280] sm:$0xff]
    %v677 = vld [vmem:[#allocation5 + $0x288] sm:$0xff]
    %v678 = vld [vmem:[#allocation5 + $0x290] sm:$0xff]
    %v679 = vld [vmem:[#allocation5 + $0x298] sm:$0xff]
    %v680 = vld [vmem:[#allocation5 + $0x2a0] sm:$0xff]
    %v681 = vld [vmem:[#allocation5 + $0x2a8] sm:$0xff]
    %v682 = vld [vmem:[#allocation5 + $0x2b0] sm:$0xff]
    %v683 = vld [vmem:[#allocation5 + $0x2b8] sm:$0xff]
    %v684 = vld [vmem:[#allocation5 + $0x2c0] sm:$0xff]
    %v685 = vld [vmem:[#allocation5 + $0x2c8] sm:$0xff]
    %v686 = vld [vmem:[#allocation5 + $0x2d0] sm:$0xff]
    %v687 = vld [vmem:[#allocation5 + $0x2d8] sm:$0xff]
    %v688 = vld [vmem:[#allocation5 + $0x2e0] sm:$0xff]
    %v689 = vld [vmem:[#allocation5 + $0x2e8] sm:$0xff]
    %v690 = vld [vmem:[#allocation5 + $0x2f0] sm:$0xff]
    %v691 = vld [vmem:[#allocation5 + $0x2f8] sm:$0xff]
    %v692 = vld [vmem:[#allocation5 + $0x300] sm:$0xff]
    %v693 = vld [vmem:[#allocation5 + $0x308] sm:$0xff]
    %v694 = vld [vmem:[#allocation5 + $0x310] sm:$0xff]
    %v695 = vld [vmem:[#allocation5 + $0x318] sm:$0xff]
    %v696 = vld [vmem:[#allocation5 + $0x320] sm:$0xff]
    %v697 = vld [vmem:[#allocation5 + $0x328] sm:$0xff]
    %v698 = vld [vmem:[#allocation5 + $0x330] sm:$0xff]
    %v699 = vld [vmem:[#allocation5 + $0x338] sm:$0xff]
    %v700 = vld [vmem:[#allocation5 + $0x340] sm:$0xff]
    %v701 = vld [vmem:[#allocation5 + $0x348] sm:$0xff]
    %v702 = vld [vmem:[#allocation5 + $0x350] sm:$0xff]
    %v703 = vld [vmem:[#allocation5 + $0x358] sm:$0xff]
    %v704 = vld [vmem:[#allocation5 + $0x360] sm:$0xff]
    %v705 = vld [vmem:[#allocation5 + $0x368] sm:$0xff]
    %v706 = vld [vmem:[#allocation5 + $0x370] sm:$0xff]
    %v707 = vld [vmem:[#allocation5 + $0x378] sm:$0xff]
    %v708 = vld [vmem:[#allocation5 + $0x380] sm:$0xff]
    %v709 = vld [vmem:[#allocation5 + $0x388] sm:$0xff]
    %v710 = vld [vmem:[#allocation5 + $0x390] sm:$0xff]
    %v711 = vld [vmem:[#allocation5 + $0x398] sm:$0xff]
    %v712 = vld [vmem:[#allocation5 + $0x3a0] sm:$0xff]
    %v713 = vld [vmem:[#allocation5 + $0x3a8] sm:$0xff]
    %v714 = vld [vmem:[#allocation5 + $0x3b0] sm:$0xff]
    %v715 = vld [vmem:[#allocation5 + $0x3b8] sm:$0xff]
    %v716 = vld [vmem:[#allocation5 + $0x3c0] sm:$0xff]
    %v717 = vld [vmem:[#allocation5 + $0x3c8] sm:$0xff]
    %v718 = vld [vmem:[#allocation5 + $0x3d0] sm:$0xff]
    %v719 = vld [vmem:[#allocation5 + $0x3d8] sm:$0xff]
    %v720 = vld [vmem:[#allocation5 + $0x3e0] sm:$0xff]
    %v721 = vld [vmem:[#allocation5 + $0x3e8] sm:$0xff]
    %v722 = vld [vmem:[#allocation5 + $0x3f0] sm:$0xff]
    %v723 = vld [vmem:[#allocation5 + $0x3f8] sm:$0xff]
    %v852 = vunpack.c.l.b16 %v596
    %v853 = vunpack.c.h.b16 %v596
    %v854 = vunpack.c.l.b16 %v597
    %v855 = vunpack.c.h.b16 %v597
    %v856 = vunpack.c.l.b16 %v598
    %v857 = vunpack.c.h.b16 %v598
    %v858 = vunpack.c.l.b16 %v599
    %v859 = vunpack.c.h.b16 %v599
    %v860 = vunpack.c.l.b16 %v600
    %v861 = vunpack.c.h.b16 %v600
    %v862 = vunpack.c.l.b16 %v601
    %v863 = vunpack.c.h.b16 %v601
    %v864 = vunpack.c.l.b16 %v602
    %v865 = vunpack.c.h.b16 %v602
    %v866 = vunpack.c.l.b16 %v603
    %v867 = vunpack.c.h.b16 %v603
    %v868 = vunpack.c.l.b16 %v604
    %v869 = vunpack.c.h.b16 %v604
    %v870 = vunpack.c.l.b16 %v605
    %v871 = vunpack.c.h.b16 %v605
    %v872 = vunpack.c.l.b16 %v606
    %v873 = vunpack.c.h.b16 %v606
    %v874 = vunpack.c.l.b16 %v607
    %v875 = vunpack.c.h.b16 %v607
    %v876 = vunpack.c.l.b16 %v608
    %v877 = vunpack.c.h.b16 %v608
    %v878 = vunpack.c.l.b16 %v609
    %v879 = vunpack.c.h.b16 %v609
    %v880 = vunpack.c.l.b16 %v610
    %v881 = vunpack.c.h.b16 %v610
    %v882 = vunpack.c.l.b16 %v611
    %v883 = vunpack.c.h.b16 %v611
    %v884 = vunpack.c.l.b16 %v612
    %v885 = vunpack.c.h.b16 %v612
    %v886 = vunpack.c.l.b16 %v613
    %v887 = vunpack.c.h.b16 %v613
    %v888 = vunpack.c.l.b16 %v614
    %v889 = vunpack.c.h.b16 %v614
    %v890 = vunpack.c.l.b16 %v615
    %v891 = vunpack.c.h.b16 %v615
    %v892 = vunpack.c.l.b16 %v616
    %v893 = vunpack.c.h.b16 %v616
    %v894 = vunpack.c.l.b16 %v617
    %v895 = vunpack.c.h.b16 %v617
    %v896 = vunpack.c.l.b16 %v618
    %v897 = vunpack.c.h.b16 %v618
    %v898 = vunpack.c.l.b16 %v619
    %v899 = vunpack.c.h.b16 %v619
    %v900 = vunpack.c.l.b16 %v620
    %v901 = vunpack.c.h.b16 %v620
    %v902 = vunpack.c.l.b16 %v621
    %v903 = vunpack.c.h.b16 %v621
    %v904 = vunpack.c.l.b16 %v622
    %v905 = vunpack.c.h.b16 %v622
    %v906 = vunpack.c.l.b16 %v623
    %v907 = vunpack.c.h.b16 %v623
    %v908 = vunpack.c.l.b16 %v624
    %v909 = vunpack.c.h.b16 %v624
    %v910 = vunpack.c.l.b16 %v625
    %v911 = vunpack.c.h.b16 %v625
    %v912 = vunpack.c.l.b16 %v626
    %v913 = vunpack.c.h.b16 %v626
    %v914 = vunpack.c.l.b16 %v627
    %v915 = vunpack.c.h.b16 %v627
    %v916 = vunpack.c.l.b16 %v628
    %v917 = vunpack.c.h.b16 %v628
    %v918 = vunpack.c.l.b16 %v629
    %v919 = vunpack.c.h.b16 %v629
    %v920 = vunpack.c.l.b16 %v630
    %v921 = vunpack.c.h.b16 %v630
    %v922 = vunpack.c.l.b16 %v631
    %v923 = vunpack.c.h.b16 %v631
    %v924 = vunpack.c.l.b16 %v632
    %v925 = vunpack.c.h.b16 %v632
    %v926 = vunpack.c.l.b16 %v633
    %v927 = vunpack.c.h.b16 %v633
    %v928 = vunpack.c.l.b16 %v634
    %v929 = vunpack.c.h.b16 %v634
    %v930 = vunpack.c.l.b16 %v635
    %v931 = vunpack.c.h.b16 %v635
    %v932 = vunpack.c.l.b16 %v636
    %v933 = vunpack.c.h.b16 %v636
    %v934 = vunpack.c.l.b16 %v637
    %v935 = vunpack.c.h.b16 %v637
    %v936 = vunpack.c.l.b16 %v638
    %v937 = vunpack.c.h.b16 %v638
    %v938 = vunpack.c.l.b16 %v639
    %v939 = vunpack.c.h.b16 %v639
    %v940 = vunpack.c.l.b16 %v640
    %v941 = vunpack.c.h.b16 %v640
    %v942 = vunpack.c.l.b16 %v641
    %v943 = vunpack.c.h.b16 %v641
    %v944 = vunpack.c.l.b16 %v642
    %v945 = vunpack.c.h.b16 %v642
    %v946 = vunpack.c.l.b16 %v643
    %v947 = vunpack.c.h.b16 %v643
    %v948 = vunpack.c.l.b16 %v644
    %v949 = vunpack.c.h.b16 %v644
    %v950 = vunpack.c.l.b16 %v645
    %v951 = vunpack.c.h.b16 %v645
    %v952 = vunpack.c.l.b16 %v646
    %v953 = vunpack.c.h.b16 %v646
    %v954 = vunpack.c.l.b16 %v647
    %v955 = vunpack.c.h.b16 %v647
    %v956 = vunpack.c.l.b16 %v648
    %v957 = vunpack.c.h.b16 %v648
    %v958 = vunpack.c.l.b16 %v649
    %v959 = vunpack.c.h.b16 %v649
    %v960 = vunpack.c.l.b16 %v650
    %v961 = vunpack.c.h.b16 %v650
    %v962 = vunpack.c.l.b16 %v651
    %v963 = vunpack.c.h.b16 %v651
    %v964 = vunpack.c.l.b16 %v652
    %v965 = vunpack.c.h.b16 %v652
    %v966 = vunpack.c.l.b16 %v653
    %v967 = vunpack.c.h.b16 %v653
    %v968 = vunpack.c.l.b16 %v654
    %v969 = vunpack.c.h.b16 %v654
    %v970 = vunpack.c.l.b16 %v655
    %v971 = vunpack.c.h.b16 %v655
    %v972 = vunpack.c.l.b16 %v656
    %v973 = vunpack.c.h.b16 %v656
    %v974 = vunpack.c.l.b16 %v657
    %v975 = vunpack.c.h.b16 %v657
    %v976 = vunpack.c.l.b16 %v658
    %v977 = vunpack.c.h.b16 %v658
    %v978 = vunpack.c.l.b16 %v659
    %v979 = vunpack.c.h.b16 %v659
    %v980 = vunpack.c.l.b16 %v660
    %v981 = vunpack.c.h.b16 %v660
    %v982 = vunpack.c.l.b16 %v661
    %v983 = vunpack.c.h.b16 %v661
    %v984 = vunpack.c.l.b16 %v662
    %v985 = vunpack.c.h.b16 %v662
    %v986 = vunpack.c.l.b16 %v663
    %v987 = vunpack.c.h.b16 %v663
    %v988 = vunpack.c.l.b16 %v664
    %v989 = vunpack.c.h.b16 %v664
    %v990 = vunpack.c.l.b16 %v665
    %v991 = vunpack.c.h.b16 %v665
    %v992 = vunpack.c.l.b16 %v666
    %v993 = vunpack.c.h.b16 %v666
    %v994 = vunpack.c.l.b16 %v667
    %v995 = vunpack.c.h.b16 %v667
    %v996 = vunpack.c.l.b16 %v668
    %v997 = vunpack.c.h.b16 %v668
    %v998 = vunpack.c.l.b16 %v669
    %v999 = vunpack.c.h.b16 %v669
    %v1000 = vunpack.c.l.b16 %v670
    %v1001 = vunpack.c.h.b16 %v670
    %v1002 = vunpack.c.l.b16 %v671
    %v1003 = vunpack.c.h.b16 %v671
    %v1004 = vunpack.c.l.b16 %v672
    %v1005 = vunpack.c.h.b16 %v672
    %v1006 = vunpack.c.l.b16 %v673
    %v1007 = vunpack.c.h.b16 %v673
    %v1008 = vunpack.c.l.b16 %v674
    %v1009 = vunpack.c.h.b16 %v674
    %v1010 = vunpack.c.l.b16 %v675
    %v1011 = vunpack.c.h.b16 %v675
    %v1012 = vunpack.c.l.b16 %v676
    %v1013 = vunpack.c.h.b16 %v676
    %v1014 = vunpack.c.l.b16 %v677
    %v1015 = vunpack.c.h.b16 %v677
    %v1016 = vunpack.c.l.b16 %v678
    %v1017 = vunpack.c.h.b16 %v678
    %v1018 = vunpack.c.l.b16 %v679
    %v1019 = vunpack.c.h.b16 %v679
    %v1020 = vunpack.c.l.b16 %v680
    %v1021 = vunpack.c.h.b16 %v680
    %v1022 = vunpack.c.l.b16 %v681
    %v1023 = vunpack.c.h.b16 %v681
    %v1024 = vunpack.c.l.b16 %v682
    %v1025 = vunpack.c.h.b16 %v682
    %v1026 = vunpack.c.l.b16 %v683
    %v1027 = vunpack.c.h.b16 %v683
    %v1028 = vunpack.c.l.b16 %v684
    %v1029 = vunpack.c.h.b16 %v684
    %v1030 = vunpack.c.l.b16 %v685
    %v1031 = vunpack.c.h.b16 %v685
    %v1032 = vunpack.c.l.b16 %v686
    %v1033 = vunpack.c.h.b16 %v686
    %v1034 = vunpack.c.l.b16 %v687
    %v1035 = vunpack.c.h.b16 %v687
    %v1036 = vunpack.c.l.b16 %v688
    %v1037 = vunpack.c.h.b16 %v688
    %v1038 = vunpack.c.l.b16 %v689
    %v1039 = vunpack.c.h.b16 %v689
    %v1040 = vunpack.c.l.b16 %v690
    %v1041 = vunpack.c.h.b16 %v690
    %v1042 = vunpack.c.l.b16 %v691
    %v1043 = vunpack.c.h.b16 %v691
    %v1044 = vunpack.c.l.b16 %v692
    %v1045 = vunpack.c.h.b16 %v692
    %v1046 = vunpack.c.l.b16 %v693
    %v1047 = vunpack.c.h.b16 %v693
    %v1048 = vunpack.c.l.b16 %v694
    %v1049 = vunpack.c.h.b16 %v694
    %v1050 = vunpack.c.l.b16 %v695
    %v1051 = vunpack.c.h.b16 %v695
    %v1052 = vunpack.c.l.b16 %v696
    %v1053 = vunpack.c.h.b16 %v696
    %v1054 = vunpack.c.l.b16 %v697
    %v1055 = vunpack.c.h.b16 %v697
    %v1056 = vunpack.c.l.b16 %v698
    %v1057 = vunpack.c.h.b16 %v698
    %v1058 = vunpack.c.l.b16 %v699
    %v1059 = vunpack.c.h.b16 %v699
    %v1060 = vunpack.c.l.b16 %v700
    %v1061 = vunpack.c.h.b16 %v700
    %v1062 = vunpack.c.l.b16 %v701
    %v1063 = vunpack.c.h.b16 %v701
    %v1064 = vunpack.c.l.b16 %v702
    %v1065 = vunpack.c.h.b16 %v702
    %v1066 = vunpack.c.l.b16 %v703
    %v1067 = vunpack.c.h.b16 %v703
    %v1068 = vunpack.c.l.b16 %v704
    %v1069 = vunpack.c.h.b16 %v704
    %v1070 = vunpack.c.l.b16 %v705
    %v1071 = vunpack.c.h.b16 %v705
    %v1072 = vunpack.c.l.b16 %v706
    %v1073 = vunpack.c.h.b16 %v706
    %v1074 = vunpack.c.l.b16 %v707
    %v1075 = vunpack.c.h.b16 %v707
    %v1076 = vunpack.c.l.b16 %v708
    %v1077 = vunpack.c.h.b16 %v708
    %v1078 = vunpack.c.l.b16 %v709
    %v1079 = vunpack.c.h.b16 %v709
    %v1080 = vunpack.c.l.b16 %v710
    %v1081 = vunpack.c.h.b16 %v710
    %v1082 = vunpack.c.l.b16 %v711
    %v1083 = vunpack.c.h.b16 %v711
    %v1084 = vunpack.c.l.b16 %v712
    %v1085 = vunpack.c.h.b16 %v712
    %v1086 = vunpack.c.l.b16 %v713
    %v1087 = vunpack.c.h.b16 %v713
    %v1088 = vunpack.c.l.b16 %v714
    %v1089 = vunpack.c.h.b16 %v714
    %v1090 = vunpack.c.l.b16 %v715
    %v1091 = vunpack.c.h.b16 %v715
    %v1092 = vunpack.c.l.b16 %v716
    %v1093 = vunpack.c.h.b16 %v716
    %v1094 = vunpack.c.l.b16 %v717
    %v1095 = vunpack.c.h.b16 %v717
    %v1096 = vunpack.c.l.b16 %v718
    %v1097 = vunpack.c.h.b16 %v718
    %v1098 = vunpack.c.l.b16 %v719
    %v1099 = vunpack.c.h.b16 %v719
    %v1100 = vunpack.c.l.b16 %v720
    %v1101 = vunpack.c.h.b16 %v720
    %v1102 = vunpack.c.l.b16 %v721
    %v1103 = vunpack.c.h.b16 %v721
    %v1104 = vunpack.c.l.b16 %v722
    %v1105 = vunpack.c.h.b16 %v722
    %v1106 = vunpack.c.l.b16 %v723
    %v1107 = vunpack.c.h.b16 %v723
    %v1108 = vpack.c.b16 %v856, %v852
    %v1109 = vpack.c.b16 %v857, %v853
    %v1110 = vpack.c.b16 %v858, %v854
    %v1111 = vpack.c.b16 %v859, %v855
    %v1112 = vpack.c.b16 %v864, %v860
    %v1113 = vpack.c.b16 %v865, %v861
    %v1114 = vpack.c.b16 %v866, %v862
    %v1115 = vpack.c.b16 %v867, %v863
    %v1116 = vpack.c.b16 %v872, %v868
    %v1117 = vpack.c.b16 %v873, %v869
    %v1118 = vpack.c.b16 %v874, %v870
    %v1119 = vpack.c.b16 %v875, %v871
    %v1120 = vpack.c.b16 %v880, %v876
    %v1121 = vpack.c.b16 %v881, %v877
    %v1122 = vpack.c.b16 %v882, %v878
    %v1123 = vpack.c.b16 %v883, %v879
    %v1124 = vpack.c.b16 %v888, %v884
    %v1125 = vpack.c.b16 %v889, %v885
    %v1126 = vpack.c.b16 %v890, %v886
    %v1127 = vpack.c.b16 %v891, %v887
    %v1128 = vpack.c.b16 %v896, %v892
    %v1129 = vpack.c.b16 %v897, %v893
    %v1130 = vpack.c.b16 %v898, %v894
    %v1131 = vpack.c.b16 %v899, %v895
    %v1132 = vpack.c.b16 %v904, %v900
    %v1133 = vpack.c.b16 %v905, %v901
    %v1134 = vpack.c.b16 %v906, %v902
    %v1135 = vpack.c.b16 %v907, %v903
    %v1136 = vpack.c.b16 %v912, %v908
    %v1137 = vpack.c.b16 %v913, %v909
    %v1138 = vpack.c.b16 %v914, %v910
    %v1139 = vpack.c.b16 %v915, %v911
    %v1140 = vpack.c.b16 %v920, %v916
    %v1141 = vpack.c.b16 %v921, %v917
    %v1142 = vpack.c.b16 %v922, %v918
    %v1143 = vpack.c.b16 %v923, %v919
    %v1144 = vpack.c.b16 %v928, %v924
    %v1145 = vpack.c.b16 %v929, %v925
    %v1146 = vpack.c.b16 %v930, %v926
    %v1147 = vpack.c.b16 %v931, %v927
    %v1148 = vpack.c.b16 %v936, %v932
    %v1149 = vpack.c.b16 %v937, %v933
    %v1150 = vpack.c.b16 %v938, %v934
    %v1151 = vpack.c.b16 %v939, %v935
    %v1152 = vpack.c.b16 %v944, %v940
    %v1153 = vpack.c.b16 %v945, %v941
    %v1154 = vpack.c.b16 %v946, %v942
    %v1155 = vpack.c.b16 %v947, %v943
    %v1156 = vpack.c.b16 %v952, %v948
    %v1157 = vpack.c.b16 %v953, %v949
    %v1158 = vpack.c.b16 %v954, %v950
    %v1159 = vpack.c.b16 %v955, %v951
    %v1160 = vpack.c.b16 %v960, %v956
    %v1161 = vpack.c.b16 %v961, %v957
    %v1162 = vpack.c.b16 %v962, %v958
    %v1163 = vpack.c.b16 %v963, %v959
    %v1164 = vpack.c.b16 %v968, %v964
    %v1165 = vpack.c.b16 %v969, %v965
    %v1166 = vpack.c.b16 %v970, %v966
    %v1167 = vpack.c.b16 %v971, %v967
    %v1168 = vpack.c.b16 %v976, %v972
    %v1169 = vpack.c.b16 %v977, %v973
    %v1170 = vpack.c.b16 %v978, %v974
    %v1171 = vpack.c.b16 %v979, %v975
    %v1172 = vpack.c.b16 %v984, %v980
    %v1173 = vpack.c.b16 %v985, %v981
    %v1174 = vpack.c.b16 %v986, %v982
    %v1175 = vpack.c.b16 %v987, %v983
    %v1176 = vpack.c.b16 %v992, %v988
    %v1177 = vpack.c.b16 %v993, %v989
    %v1178 = vpack.c.b16 %v994, %v990
    %v1179 = vpack.c.b16 %v995, %v991
    %v1180 = vpack.c.b16 %v1000, %v996
    %v1181 = vpack.c.b16 %v1001, %v997
    %v1182 = vpack.c.b16 %v1002, %v998
    %v1183 = vpack.c.b16 %v1003, %v999
    %v1184 = vpack.c.b16 %v1008, %v1004
    %v1185 = vpack.c.b16 %v1009, %v1005
    %v1186 = vpack.c.b16 %v1010, %v1006
    %v1187 = vpack.c.b16 %v1011, %v1007
    %v1188 = vpack.c.b16 %v1016, %v1012
    %v1189 = vpack.c.b16 %v1017, %v1013
    %v1190 = vpack.c.b16 %v1018, %v1014
    %v1191 = vpack.c.b16 %v1019, %v1015
    %v1192 = vpack.c.b16 %v1024, %v1020
    %v1193 = vpack.c.b16 %v1025, %v1021
    %v1194 = vpack.c.b16 %v1026, %v1022
    %v1195 = vpack.c.b16 %v1027, %v1023
    %v1196 = vpack.c.b16 %v1032, %v1028
    %v1197 = vpack.c.b16 %v1033, %v1029
    %v1198 = vpack.c.b16 %v1034, %v1030
    %v1199 = vpack.c.b16 %v1035, %v1031
    %v1200 = vpack.c.b16 %v1040, %v1036
    %v1201 = vpack.c.b16 %v1041, %v1037
    %v1202 = vpack.c.b16 %v1042, %v1038
    %v1203 = vpack.c.b16 %v1043, %v1039
    %v1204 = vpack.c.b16 %v1048, %v1044
    %v1205 = vpack.c.b16 %v1049, %v1045
    %v1206 = vpack.c.b16 %v1050, %v1046
    %v1207 = vpack.c.b16 %v1051, %v1047
    %v1208 = vpack.c.b16 %v1056, %v1052
    %v1209 = vpack.c.b16 %v1057, %v1053
    %v1210 = vpack.c.b16 %v1058, %v1054
    %v1211 = vpack.c.b16 %v1059, %v1055
    %v1212 = vpack.c.b16 %v1064, %v1060
    %v1213 = vpack.c.b16 %v1065, %v1061
    %v1214 = vpack.c.b16 %v1066, %v1062
    %v1215 = vpack.c.b16 %v1067, %v1063
    %v1216 = vpack.c.b16 %v1072, %v1068
    %v1217 = vpack.c.b16 %v1073, %v1069
    %v1218 = vpack.c.b16 %v1074, %v1070
    %v1219 = vpack.c.b16 %v1075, %v1071
    %v1220 = vpack.c.b16 %v1080, %v1076
    %v1221 = vpack.c.b16 %v1081, %v1077
    %v1222 = vpack.c.b16 %v1082, %v1078
    %v1223 = vpack.c.b16 %v1083, %v1079
    %v1224 = vpack.c.b16 %v1088, %v1084
    %v1225 = vpack.c.b16 %v1089, %v1085
    %v1226 = vpack.c.b16 %v1090, %v1086
    %v1227 = vpack.c.b16 %v1091, %v1087
    %v1228 = vpack.c.b16 %v1096, %v1092
    %v1229 = vpack.c.b16 %v1097, %v1093
    %v1230 = vpack.c.b16 %v1098, %v1094
    %v1231 = vpack.c.b16 %v1099, %v1095
    %v1232 = vpack.c.b16 %v1104, %v1100
    %v1233 = vpack.c.b16 %v1105, %v1101
    %v1234 = vpack.c.b16 %v1106, %v1102
    %v1235 = vpack.c.b16 %v1107, %v1103
    %1364 = vmatprep.subr.bf16.mxu0 %v1137
    %1365 = vmatpush1.bf16.msra.mxu0 %v1136
    %1366 = vmatprep.subr.bf16.mxu0 %v1133
    %1367 = vmatpush1.bf16.msra.mxu0 %v1132
    %1368 = vmatprep.subr.bf16.mxu0 %v1129
    %1369 = vmatpush1.bf16.msra.mxu0 %v1128
    %1370 = vmatprep.subr.bf16.mxu0 %v1125
    %1371 = vmatpush1.bf16.msra.mxu0 %v1124
    %1372 = vmatprep.subr.bf16.mxu0 %v1121
    %1373 = vmatpush1.bf16.msra.mxu0 %v1120
    %1374 = vmatprep.subr.bf16.mxu0 %v1117
    %1375 = vmatpush1.bf16.msra.mxu0 %v1116
    %1376 = vmatprep.subr.bf16.mxu0 %v1113
    %1377 = vmatpush1.bf16.msra.mxu0 %v1112
    %1378 = vmatprep.subr.bf16.mxu0 %v1109
    %1379 = vmatpush1.bf16.msra.mxu0 %v1108
    %1380 = vmatprep.subr.bf16.mxu0 %v1169
    %1381 = vmatpush2.bf16.msra.mxu0 %v1168
    %1382 = vmatprep.subr.bf16.mxu0 %v1165
    %1383 = vmatpush2.bf16.msra.mxu0 %v1164
    %1384 = vmatprep.subr.bf16.mxu0 %v1161
    %1385 = vmatpush2.bf16.msra.mxu0 %v1160
    %1386 = vmatprep.subr.bf16.mxu0 %v1157
    %1387 = vmatpush2.bf16.msra.mxu0 %v1156
    %1388 = vmatprep.subr.bf16.mxu0 %v1153
    %1389 = vmatpush2.bf16.msra.mxu0 %v1152
    %1390 = vmatprep.subr.bf16.mxu0 %v1149
    %1391 = vmatpush2.bf16.msra.mxu0 %v1148
    %1392 = vmatprep.subr.bf16.mxu0 %v1145
    %1393 = vmatpush2.bf16.msra.mxu0 %v1144
    %1394 = vmatprep.subr.bf16.mxu0 %v1141
    %1395 = vmatpush2.bf16.msra.mxu0 %v1140
    %1396 = vmatprep.mubr.bf16.mxu0 %v593
    %1397 = vmatmul.mubr.bf16.gmra.mxu0 %v592
    %v1398 = vpop.f32.mrf.mxu0
    %v1399 = vadd.f32 0.0, %v1398
    %v1400 = vpop.f32.mrf.mxu0
    %v1401 = vadd.f32 0.0, %v1400
    %v1402 = vpop.f32.mrf.mxu0
    %v1403 = vpop.f32.mrf.mxu0
    %1404 = vdwg.mxu0
    %1405 = vmatprep.subr.bf16.mxu0 %v1201
    %1406 = vmatpush1.bf16.msra.mxu0 %v1200
    %1407 = vmatprep.subr.bf16.mxu0 %v1197
    %1408 = vmatpush1.bf16.msra.mxu0 %v1196
    %1409 = vmatprep.subr.bf16.mxu0 %v1193
    %1410 = vmatpush1.bf16.msra.mxu0 %v1192
    %1411 = vmatprep.subr.bf16.mxu0 %v1189
    %1412 = vmatpush1.bf16.msra.mxu0 %v1188
    %1413 = vmatprep.subr.bf16.mxu0 %v1185
    %1414 = vmatpush1.bf16.msra.mxu0 %v1184
    %1415 = vmatprep.subr.bf16.mxu0 %v1181
    %1416 = vmatpush1.bf16.msra.mxu0 %v1180
    %1417 = vmatprep.subr.bf16.mxu0 %v1177
    %1418 = vmatpush1.bf16.msra.mxu0 %v1176
    %1419 = vmatprep.subr.bf16.mxu0 %v1173
    %1420 = vmatpush1.bf16.msra.mxu0 %v1172
    %1421 = vmatprep.subr.bf16.mxu0 %v1233
    %1422 = vmatpush2.bf16.msra.mxu0 %v1232
    %1423 = vmatprep.subr.bf16.mxu0 %v1229
    %1424 = vmatpush2.bf16.msra.mxu0 %v1228
    %1425 = vmatprep.subr.bf16.mxu0 %v1225
    %1426 = vmatpush2.bf16.msra.mxu0 %v1224
    %1427 = vmatprep.subr.bf16.mxu0 %v1221
    %1428 = vmatpush2.bf16.msra.mxu0 %v1220
    %1429 = vmatprep.subr.bf16.mxu0 %v1217
    %1430 = vmatpush2.bf16.msra.mxu0 %v1216
    %1431 = vmatprep.subr.bf16.mxu0 %v1213
    %1432 = vmatpush2.bf16.msra.mxu0 %v1212
    %1433 = vmatprep.subr.bf16.mxu0 %v1209
    %1434 = vmatpush2.bf16.msra.mxu0 %v1208
    %1435 = vmatprep.subr.bf16.mxu0 %v1205
    %1436 = vmatpush2.bf16.msra.mxu0 %v1204
    %1437 = vmatprep.mubr.bf16.mxu0 %v595
    %1438 = vmatmul.mubr.bf16.gmra.mxu0 %v594
    %v1439 = vpop.f32.mrf.mxu0
    %v1440 = vadd.f32 %v1399, %v1439
    %v1441 = vpop.f32.mrf.mxu0
    %v1442 = vadd.f32 %v1401, %v1441
    %v1443 = vpop.f32.mrf.mxu0
    %v1444 = vpop.f32.mrf.mxu0
    %1445 = vdwg.mxu0
    %1446 = vmatprep.subr.bf16.mxu0 %v1139
    %1447 = vmatpush1.bf16.msra.mxu0 %v1138
    %1448 = vmatprep.subr.bf16.mxu0 %v1135
    %1449 = vmatpush1.bf16.msra.mxu0 %v1134
    %1450 = vmatprep.subr.bf16.mxu0 %v1131
    %1451 = vmatpush1.bf16.msra.mxu0 %v1130
    %1452 = vmatprep.subr.bf16.mxu0 %v1127
    %1453 = vmatpush1.bf16.msra.mxu0 %v1126
    %1454 = vmatprep.subr.bf16.mxu0 %v1123
    %1455 = vmatpush1.bf16.msra.mxu0 %v1122
    %1456 = vmatprep.subr.bf16.mxu0 %v1119
    %1457 = vmatpush1.bf16.msra.mxu0 %v1118
    %1458 = vmatprep.subr.bf16.mxu0 %v1115
    %1459 = vmatpush1.bf16.msra.mxu0 %v1114
    %1460 = vmatprep.subr.bf16.mxu0 %v1111
    %1461 = vmatpush1.bf16.msra.mxu0 %v1110
    %1462 = vmatprep.subr.bf16.mxu0 %v1171
    %1463 = vmatpush2.bf16.msra.mxu0 %v1170
    %1464 = vmatprep.subr.bf16.mxu0 %v1167
    %1465 = vmatpush2.bf16.msra.mxu0 %v1166
    %1466 = vmatprep.subr.bf16.mxu0 %v1163
    %1467 = vmatpush2.bf16.msra.mxu0 %v1162
    %1468 = vmatprep.subr.bf16.mxu0 %v1159
    %1469 = vmatpush2.bf16.msra.mxu0 %v1158
    %1470 = vmatprep.subr.bf16.mxu0 %v1155
    %1471 = vmatpush2.bf16.msra.mxu0 %v1154
    %1472 = vmatprep.subr.bf16.mxu0 %v1151
    %1473 = vmatpush2.bf16.msra.mxu0 %v1150
    %1474 = vmatprep.subr.bf16.mxu0 %v1147
    %1475 = vmatpush2.bf16.msra.mxu0 %v1146
    %1476 = vmatprep.subr.bf16.mxu0 %v1143
    %1477 = vmatpush2.bf16.msra.mxu0 %v1142
    %1478 = vmatprep.mubr.bf16.mxu0 %v593
    %1479 = vmatmul.mubr.bf16.gmra.mxu0 %v592
    %v1480 = vpop.f32.mrf.mxu0
    %v1481 = vadd.f32 0.0, %v1480
    %v1482 = vpop.f32.mrf.mxu0
    %v1483 = vadd.f32 0.0, %v1482
    %v1484 = vpop.f32.mrf.mxu0
    %v1485 = vpop.f32.mrf.mxu0
    %1486 = vdwg.mxu0
    %1487 = vmatprep.subr.bf16.mxu0 %v1203
    %1488 = vmatpush1.bf16.msra.mxu0 %v1202
    %1489 = vmatprep.subr.bf16.mxu0 %v1199
    %1490 = vmatpush1.bf16.msra.mxu0 %v1198
    %1491 = vmatprep.subr.bf16.mxu0 %v1195
    %1492 = vmatpush1.bf16.msra.mxu0 %v1194
    %1493 = vmatprep.subr.bf16.mxu0 %v1191
    %1494 = vmatpush1.bf16.msra.mxu0 %v1190
    %1495 = vmatprep.subr.bf16.mxu0 %v1187
    %1496 = vmatpush1.bf16.msra.mxu0 %v1186
    %1497 = vmatprep.subr.bf16.mxu0 %v1183
    %1498 = vmatpush1.bf16.msra.mxu0 %v1182
    %1499 = vmatprep.subr.bf16.mxu0 %v1179
    %1500 = vmatpush1.bf16.msra.mxu0 %v1178
    %1501 = vmatprep.subr.bf16.mxu0 %v1175
    %1502 = vmatpush1.bf16.msra.mxu0 %v1174
    %1503 = vmatprep.subr.bf16.mxu0 %v1235
    %1504 = vmatpush2.bf16.msra.mxu0 %v1234
    %1505 = vmatprep.subr.bf16.mxu0 %v1231
    %1506 = vmatpush2.bf16.msra.mxu0 %v1230
    %1507 = vmatprep.subr.bf16.mxu0 %v1227
    %1508 = vmatpush2.bf16.msra.mxu0 %v1226
    %1509 = vmatprep.subr.bf16.mxu0 %v1223
    %1510 = vmatpush2.bf16.msra.mxu0 %v1222
    %1511 = vmatprep.subr.bf16.mxu0 %v1219
    %1512 = vmatpush2.bf16.msra.mxu0 %v1218
    %1513 = vmatprep.subr.bf16.mxu0 %v1215
    %1514 = vmatpush2.bf16.msra.mxu0 %v1214
    %1515 = vmatprep.subr.bf16.mxu0 %v1211
    %1516 = vmatpush2.bf16.msra.mxu0 %v1210
    %1517 = vmatprep.subr.bf16.mxu0 %v1207
    %1518 = vmatpush2.bf16.msra.mxu0 %v1206
    %1519 = vmatprep.mubr.bf16.mxu0 %v595
    %1520 = vmatmul.mubr.bf16.gmra.mxu0 %v594
    %v1521 = vpop.f32.mrf.mxu0
    %v1522 = vadd.f32 %v1481, %v1521
    %v1523 = vpop.f32.mrf.mxu0
    %v1524 = vadd.f32 %v1483, %v1523
    %v1525 = vpop.f32.mrf.mxu0
    %v1526 = vpop.f32.mrf.mxu0
    %1527 = vdwg.mxu0
    %v1528 = vrot.slane %v1440, 4
    %v1529 = vadd.f32 %v1440, %v1528
    %v1530 = vrot.slane %v1529, 2
    %v1531 = vadd.f32 %v1529, %v1530
    %v1532 = vrot.slane %v1531, 1
    %v1533 = vadd.f32 %v1531, %v1532
    %v1534 = vrot.slane %v1442, 4
    %v1535 = vadd.f32 %v1442, %v1534
    %v1536 = vrot.slane %v1535, 2
    %v1537 = vadd.f32 %v1535, %v1536
    %v1538 = vrot.slane %v1537, 1
    %v1539 = vadd.f32 %v1537, %v1538
    %v1540 = vrot.slane %v1522, 4
    %v1541 = vadd.f32 %v1522, %v1540
    %v1542 = vrot.slane %v1541, 2
    %v1543 = vadd.f32 %v1541, %v1542
    %v1544 = vrot.slane %v1543, 1
    %v1545 = vadd.f32 %v1543, %v1544
    %v1546 = vrot.slane %v1524, 4
    %v1547 = vadd.f32 %v1524, %v1546
    %v1548 = vrot.slane %v1547, 2
    %v1549 = vadd.f32 %v1547, %v1548
    %v1550 = vrot.slane %v1549, 1
    %v1551 = vadd.f32 %v1549, %v1550
    %v1552 = vmul.f32 %v1440, %v1440
    %v1553 = vmul.f32 %v1442, %v1442
    %v1554 = vmul.f32 %v1522, %v1522
    %v1555 = vmul.f32 %v1524, %v1524
    %v1556 = vrot.slane %v1552, 4
    %v1557 = vadd.f32 %v1552, %v1556
    %v1558 = vrot.slane %v1557, 2
    %v1559 = vadd.f32 %v1557, %v1558
    %v1560 = vrot.slane %v1559, 1
    %v1561 = vadd.f32 %v1559, %v1560
    %v1562 = vrot.slane %v1553, 4
    %v1563 = vadd.f32 %v1553, %v1562
    %v1564 = vrot.slane %v1563, 2
    %v1565 = vadd.f32 %v1563, %v1564
    %v1566 = vrot.slane %v1565, 1
    %v1567 = vadd.f32 %v1565, %v1566
    %v1568 = vrot.slane %v1554, 4
    %v1569 = vadd.f32 %v1554, %v1568
    %v1570 = vrot.slane %v1569, 2
    %v1571 = vadd.f32 %v1569, %v1570
    %v1572 = vrot.slane %v1571, 1
    %v1573 = vadd.f32 %v1571, %v1572
    %v1574 = vrot.slane %v1555, 4
    %v1575 = vadd.f32 %v1555, %v1574
    %v1576 = vrot.slane %v1575, 2
    %v1577 = vadd.f32 %v1575, %v1576
    %v1578 = vrot.slane %v1577, 1
    %v1579 = vadd.f32 %v1577, %v1578
    %v1580 = vmul.f32 %v1533, 0.125
    %v1581 = vmul.f32 %v1539, 0.125
    %v1582 = vmul.f32 %v1545, 0.125
    %v1583 = vmul.f32 %v1551, 0.125
    %v1584 = vmul.f32 %v1561, 0.125
    %v1585 = vmul.f32 %v1567, 0.125
    %v1586 = vmul.f32 %v1573, 0.125
    %v1587 = vmul.f32 %v1579, 0.125
    %v1588 = vmul.f32 %v1580, %v1580
    %v1589 = vmul.f32 %v1581, %v1581
    %v1590 = vmul.f32 %v1582, %v1582
    %v1591 = vmul.f32 %v1583, %v1583
    %v1592 = vsub.f32 %v1584, %v1588
    %v1593 = vsub.f32 %v1585, %v1589
    %v1594 = vsub.f32 %v1586, %v1590
    %v1595 = vsub.f32 %v1587, %v1591
    %v1596 = vld [vmem:[%s5] sm:$0xf]
    %v1597 = vadd.f32 %v1592, 1e-05
    %v1598 = vadd.f32 %v1593, 1e-05
    %v1599 = vadd.f32 %v1594, 1e-05
    %v1600 = vadd.f32 %v1595, 1e-05
    %v1601 = vrsqrt.pop %v1597
    %v1602 = vrsqrt.pop %v1598
    %v1603 = vrsqrt.pop %v1599
    %v1604 = vrsqrt.pop %v1600
    %v1609 = vcombine.low %v1601, %v1602
    %v1610 = vcombine.low %v1603, %v1604
    %v1612 = vunpack.c.l.s4 1966171168
    %v1613 = vunpack.c.0.s8 %v1612
    %v1614 = vlaneseq
    %v1615 = vshrl.u32 %v1614, 7
    %v1616 = vsub.s32 %v1613, %v1615
    %v1617 = vrot.slane %v1609, %v1616
    %v1619 = vunpack.c.l.s4 1966171168
    %v1620 = vunpack.c.0.s8 %v1619
    %v1621 = vlaneseq
    %v1622 = vshrl.u32 %v1621, 7
    %v1623 = vsub.s32 %v1620, %v1622
    %v1624 = vrot.slane %v1610, %v1623
    %v1625 = vcombine.low %v1617, %v1624
    %v1627 = vunpack.c.l.s4 1966171168
    %v1628 = vunpack.c.0.s8 %v1627
    %v1629 = vlaneseq
    %v1630 = vshrl.u32 %v1629, 7
    %v1631 = vsub.s32 %v1628, %v1630
    %v1632 = vrot.slane %v1625, %v1631
    %v1634 = vmul.f32 %v1596, %v1632
    %v1635 = vld [vmem:[%s6] sm:$0xf]
    %v1637 = vlaneseq
    %v1638 = vshrl.u32 %v1637, 7
    %v1639 = vsub.s32 0, %v1638
    %v1640 = vrot.slane %v1634, %v1639
    %v1641 = vlaneseq
    %v1642 = vshrl.u32 %v1641, 7
    %v1643 = vsub.s32 1, %v1642
    %v1644 = vrot.slane %v1634, %v1643
    %v1645 = vlaneseq
    %v1646 = vshrl.u32 %v1645, 7
    %v1647 = vsub.s32 2, %v1646
    %v1648 = vrot.slane %v1634, %v1647
    %v1649 = vlaneseq
    %v1650 = vshrl.u32 %v1649, 7
    %v1651 = vsub.s32 3, %v1650
    %v1652 = vrot.slane %v1634, %v1651
    %v1657 = vmul.f32 %v1580, %v1640
    %v1658 = vmul.f32 %v1581, %v1644
    %v1659 = vmul.f32 %v1582, %v1648
    %v1660 = vmul.f32 %v1583, %v1652
    %v1665 = vcombine.low %v1657, %v1658
    %v1666 = vcombine.low %v1659, %v1660
    %v1668 = vunpack.c.l.s4 1966171168
    %v1669 = vunpack.c.0.s8 %v1668
    %v1670 = vlaneseq
    %v1671 = vshrl.u32 %v1670, 7
    %v1672 = vsub.s32 %v1669, %v1671
    %v1673 = vrot.slane %v1665, %v1672
    %v1675 = vunpack.c.l.s4 1966171168
    %v1676 = vunpack.c.0.s8 %v1675
    %v1677 = vlaneseq
    %v1678 = vshrl.u32 %v1677, 7
    %v1679 = vsub.s32 %v1676, %v1678
    %v1680 = vrot.slane %v1666, %v1679
    %v1681 = vcombine.low %v1673, %v1680
    %v1683 = vunpack.c.l.s4 1966171168
    %v1684 = vunpack.c.0.s8 %v1683
    %v1685 = vlaneseq
    %v1686 = vshrl.u32 %v1685, 7
    %v1687 = vsub.s32 %v1684, %v1686
    %v1688 = vrot.slane %v1681, %v1687
    %v1690 = vsub.f32 %v1635, %v1688
    %v1691 = vmul.f32 %v1440, %v1640
    %v1692 = vmul.f32 %v1442, %v1644
    %v1693 = vmul.f32 %v1522, %v1648
    %v1694 = vmul.f32 %v1524, %v1652
    %v1696 = vlaneseq
    %v1697 = vshrl.u32 %v1696, 7
    %v1698 = vsub.s32 0, %v1697
    %v1699 = vrot.slane %v1690, %v1698
    %v1700 = vlaneseq
    %v1701 = vshrl.u32 %v1700, 7
    %v1702 = vsub.s32 1, %v1701
    %v1703 = vrot.slane %v1690, %v1702
    %v1704 = vlaneseq
    %v1705 = vshrl.u32 %v1704, 7
    %v1706 = vsub.s32 2, %v1705
    %v1707 = vrot.slane %v1690, %v1706
    %v1708 = vlaneseq
    %v1709 = vshrl.u32 %v1708, 7
    %v1710 = vsub.s32 3, %v1709
    %v1711 = vrot.slane %v1690, %v1710
    %v1716 = vadd.f32 %v1691, %v1699
    %v1717 = vadd.f32 %v1692, %v1703
    %v1718 = vadd.f32 %v1693, %v1707
    %v1719 = vadd.f32 %v1694, %v1711
    %v1720 = vmax.f32 %v1716, 0.0
    %v1721 = vmax.f32 %v1717, 0.0
    %v1722 = vmax.f32 %v1718, 0.0
    %v1723 = vmax.f32 %v1719, 0.0
    %v1724 = vpack.c.bf16 %v1720, %v1720
    %v1725 = vpack.c.bf16 %v1721, %v1721
    %v1726 = vpack.c.bf16 %v1722, %v1722
    %v1727 = vpack.c.bf16 %v1723, %v1723
    %v1728 = vld [vmem:[#allocation7] sm:$0xff]
    %v1729 = vld [vmem:[#allocation7 + $0x8] sm:$0xff]
    %v1730 = vld [vmem:[#allocation7 + $0x10] sm:$0xff]
    %v1731 = vld [vmem:[#allocation7 + $0x18] sm:$0xff]
    %v1732 = vld [vmem:[#allocation7 + $0x20] sm:$0xff]
    %v1733 = vld [vmem:[#allocation7 + $0x28] sm:$0xff]
    %v1734 = vld [vmem:[#allocation7 + $0x30] sm:$0xff]
    %v1735 = vld [vmem:[#allocation7 + $0x38] sm:$0xff]
    %v1736 = vld [vmem:[#allocation7 + $0x40] sm:$0xff]
    %v1737 = vld [vmem:[#allocation7 + $0x48] sm:$0xff]
    %v1738 = vld [vmem:[#allocation7 + $0x50] sm:$0xff]
    %v1739 = vld [vmem:[#allocation7 + $0x58] sm:$0xff]
    %v1740 = vld [vmem:[#allocation7 + $0x60] sm:$0xff]
    %v1741 = vld [vmem:[#allocation7 + $0x68] sm:$0xff]
    %v1742 = vld [vmem:[#allocation7 + $0x70] sm:$0xff]
    %v1743 = vld [vmem:[#allocation7 + $0x78] sm:$0xff]
    %v1744 = vld [vmem:[#allocation7 + $0x80] sm:$0xff]
    %v1745 = vld [vmem:[#allocation7 + $0x88] sm:$0xff]
    %v1746 = vld [vmem:[#allocation7 + $0x90] sm:$0xff]
    %v1747 = vld [vmem:[#allocation7 + $0x98] sm:$0xff]
    %v1748 = vld [vmem:[#allocation7 + $0xa0] sm:$0xff]
    %v1749 = vld [vmem:[#allocation7 + $0xa8] sm:$0xff]
    %v1750 = vld [vmem:[#allocation7 + $0xb0] sm:$0xff]
    %v1751 = vld [vmem:[#allocation7 + $0xb8] sm:$0xff]
    %v1752 = vld [vmem:[#allocation7 + $0xc0] sm:$0xff]
    %v1753 = vld [vmem:[#allocation7 + $0xc8] sm:$0xff]
    %v1754 = vld [vmem:[#allocation7 + $0xd0] sm:$0xff]
    %v1755 = vld [vmem:[#allocation7 + $0xd8] sm:$0xff]
    %v1756 = vld [vmem:[#allocation7 + $0xe0] sm:$0xff]
    %v1757 = vld [vmem:[#allocation7 + $0xe8] sm:$0xff]
    %v1758 = vld [vmem:[#allocation7 + $0xf0] sm:$0xff]
    %v1759 = vld [vmem:[#allocation7 + $0xf8] sm:$0xff]
    %v1760 = vld [vmem:[#allocation7 + $0x100] sm:$0xff]
    %v1761 = vld [vmem:[#allocation7 + $0x108] sm:$0xff]
    %v1762 = vld [vmem:[#allocation7 + $0x110] sm:$0xff]
    %v1763 = vld [vmem:[#allocation7 + $0x118] sm:$0xff]
    %v1764 = vld [vmem:[#allocation7 + $0x120] sm:$0xff]
    %v1765 = vld [vmem:[#allocation7 + $0x128] sm:$0xff]
    %v1766 = vld [vmem:[#allocation7 + $0x130] sm:$0xff]
    %v1767 = vld [vmem:[#allocation7 + $0x138] sm:$0xff]
    %v1768 = vld [vmem:[#allocation7 + $0x140] sm:$0xff]
    %v1769 = vld [vmem:[#allocation7 + $0x148] sm:$0xff]
    %v1770 = vld [vmem:[#allocation7 + $0x150] sm:$0xff]
    %v1771 = vld [vmem:[#allocation7 + $0x158] sm:$0xff]
    %v1772 = vld [vmem:[#allocation7 + $0x160] sm:$0xff]
    %v1773 = vld [vmem:[#allocation7 + $0x168] sm:$0xff]
    %v1774 = vld [vmem:[#allocation7 + $0x170] sm:$0xff]
    %v1775 = vld [vmem:[#allocation7 + $0x178] sm:$0xff]
    %v1776 = vld [vmem:[#allocation7 + $0x180] sm:$0xff]
    %v1777 = vld [vmem:[#allocation7 + $0x188] sm:$0xff]
    %v1778 = vld [vmem:[#allocation7 + $0x190] sm:$0xff]
    %v1779 = vld [vmem:[#allocation7 + $0x198] sm:$0xff]
    %v1780 = vld [vmem:[#allocation7 + $0x1a0] sm:$0xff]
    %v1781 = vld [vmem:[#allocation7 + $0x1a8] sm:$0xff]
    %v1782 = vld [vmem:[#allocation7 + $0x1b0] sm:$0xff]
    %v1783 = vld [vmem:[#allocation7 + $0x1b8] sm:$0xff]
    %v1784 = vld [vmem:[#allocation7 + $0x1c0] sm:$0xff]
    %v1785 = vld [vmem:[#allocation7 + $0x1c8] sm:$0xff]
    %v1786 = vld [vmem:[#allocation7 + $0x1d0] sm:$0xff]
    %v1787 = vld [vmem:[#allocation7 + $0x1d8] sm:$0xff]
    %v1788 = vld [vmem:[#allocation7 + $0x1e0] sm:$0xff]
    %v1789 = vld [vmem:[#allocation7 + $0x1e8] sm:$0xff]
    %v1790 = vld [vmem:[#allocation7 + $0x1f0] sm:$0xff]
    %v1791 = vld [vmem:[#allocation7 + $0x1f8] sm:$0xff]
    %v1856 = vunpack.c.l.b16 %v1728
    %v1857 = vunpack.c.h.b16 %v1728
    %v1858 = vunpack.c.l.b16 %v1729
    %v1859 = vunpack.c.h.b16 %v1729
    %v1860 = vunpack.c.l.b16 %v1730
    %v1861 = vunpack.c.h.b16 %v1730
    %v1862 = vunpack.c.l.b16 %v1731
    %v1863 = vunpack.c.h.b16 %v1731
    %v1864 = vunpack.c.l.b16 %v1732
    %v1865 = vunpack.c.h.b16 %v1732
    %v1866 = vunpack.c.l.b16 %v1733
    %v1867 = vunpack.c.h.b16 %v1733
    %v1868 = vunpack.c.l.b16 %v1734
    %v1869 = vunpack.c.h.b16 %v1734
    %v1870 = vunpack.c.l.b16 %v1735
    %v1871 = vunpack.c.h.b16 %v1735
    %v1872 = vunpack.c.l.b16 %v1736
    %v1873 = vunpack.c.h.b16 %v1736
    %v1874 = vunpack.c.l.b16 %v1737
    %v1875 = vunpack.c.h.b16 %v1737
    %v1876 = vunpack.c.l.b16 %v1738
    %v1877 = vunpack.c.h.b16 %v1738
    %v1878 = vunpack.c.l.b16 %v1739
    %v1879 = vunpack.c.h.b16 %v1739
    %v1880 = vunpack.c.l.b16 %v1740
    %v1881 = vunpack.c.h.b16 %v1740
    %v1882 = vunpack.c.l.b16 %v1741
    %v1883 = vunpack.c.h.b16 %v1741
    %v1884 = vunpack.c.l.b16 %v1742
    %v1885 = vunpack.c.h.b16 %v1742
    %v1886 = vunpack.c.l.b16 %v1743
    %v1887 = vunpack.c.h.b16 %v1743
    %v1888 = vunpack.c.l.b16 %v1744
    %v1889 = vunpack.c.h.b16 %v1744
    %v1890 = vunpack.c.l.b16 %v1745
    %v1891 = vunpack.c.h.b16 %v1745
    %v1892 = vunpack.c.l.b16 %v1746
    %v1893 = vunpack.c.h.b16 %v1746
    %v1894 = vunpack.c.l.b16 %v1747
    %v1895 = vunpack.c.h.b16 %v1747
    %v1896 = vunpack.c.l.b16 %v1748
    %v1897 = vunpack.c.h.b16 %v1748
    %v1898 = vunpack.c.l.b16 %v1749
    %v1899 = vunpack.c.h.b16 %v1749
    %v1900 = vunpack.c.l.b16 %v1750
    %v1901 = vunpack.c.h.b16 %v1750
    %v1902 = vunpack.c.l.b16 %v1751
    %v1903 = vunpack.c.h.b16 %v1751
    %v1904 = vunpack.c.l.b16 %v1752
    %v1905 = vunpack.c.h.b16 %v1752
    %v1906 = vunpack.c.l.b16 %v1753
    %v1907 = vunpack.c.h.b16 %v1753
    %v1908 = vunpack.c.l.b16 %v1754
    %v1909 = vunpack.c.h.b16 %v1754
    %v1910 = vunpack.c.l.b16 %v1755
    %v1911 = vunpack.c.h.b16 %v1755
    %v1912 = vunpack.c.l.b16 %v1756
    %v1913 = vunpack.c.h.b16 %v1756
    %v1914 = vunpack.c.l.b16 %v1757
    %v1915 = vunpack.c.h.b16 %v1757
    %v1916 = vunpack.c.l.b16 %v1758
    %v1917 = vunpack.c.h.b16 %v1758
    %v1918 = vunpack.c.l.b16 %v1759
    %v1919 = vunpack.c.h.b16 %v1759
    %v1920 = vunpack.c.l.b16 %v1760
    %v1921 = vunpack.c.h.b16 %v1760
    %v1922 = vunpack.c.l.b16 %v1761
    %v1923 = vunpack.c.h.b16 %v1761
    %v1924 = vunpack.c.l.b16 %v1762
    %v1925 = vunpack.c.h.b16 %v1762
    %v1926 = vunpack.c.l.b16 %v1763
    %v1927 = vunpack.c.h.b16 %v1763
    %v1928 = vunpack.c.l.b16 %v1764
    %v1929 = vunpack.c.h.b16 %v1764
    %v1930 = vunpack.c.l.b16 %v1765
    %v1931 = vunpack.c.h.b16 %v1765
    %v1932 = vunpack.c.l.b16 %v1766
    %v1933 = vunpack.c.h.b16 %v1766
    %v1934 = vunpack.c.l.b16 %v1767
    %v1935 = vunpack.c.h.b16 %v1767
    %v1936 = vunpack.c.l.b16 %v1768
    %v1937 = vunpack.c.h.b16 %v1768
    %v1938 = vunpack.c.l.b16 %v1769
    %v1939 = vunpack.c.h.b16 %v1769
    %v1940 = vunpack.c.l.b16 %v1770
    %v1941 = vunpack.c.h.b16 %v1770
    %v1942 = vunpack.c.l.b16 %v1771
    %v1943 = vunpack.c.h.b16 %v1771
    %v1944 = vunpack.c.l.b16 %v1772
    %v1945 = vunpack.c.h.b16 %v1772
    %v1946 = vunpack.c.l.b16 %v1773
    %v1947 = vunpack.c.h.b16 %v1773
    %v1948 = vunpack.c.l.b16 %v1774
    %v1949 = vunpack.c.h.b16 %v1774
    %v1950 = vunpack.c.l.b16 %v1775
    %v1951 = vunpack.c.h.b16 %v1775
    %v1952 = vunpack.c.l.b16 %v1776
    %v1953 = vunpack.c.h.b16 %v1776
    %v1954 = vunpack.c.l.b16 %v1777
    %v1955 = vunpack.c.h.b16 %v1777
    %v1956 = vunpack.c.l.b16 %v1778
    %v1957 = vunpack.c.h.b16 %v1778
    %v1958 = vunpack.c.l.b16 %v1779
    %v1959 = vunpack.c.h.b16 %v1779
    %v1960 = vunpack.c.l.b16 %v1780
    %v1961 = vunpack.c.h.b16 %v1780
    %v1962 = vunpack.c.l.b16 %v1781
    %v1963 = vunpack.c.h.b16 %v1781
    %v1964 = vunpack.c.l.b16 %v1782
    %v1965 = vunpack.c.h.b16 %v1782
    %v1966 = vunpack.c.l.b16 %v1783
    %v1967 = vunpack.c.h.b16 %v1783
    %v1968 = vunpack.c.l.b16 %v1784
    %v1969 = vunpack.c.h.b16 %v1784
    %v1970 = vunpack.c.l.b16 %v1785
    %v1971 = vunpack.c.h.b16 %v1785
    %v1972 = vunpack.c.l.b16 %v1786
    %v1973 = vunpack.c.h.b16 %v1786
    %v1974 = vunpack.c.l.b16 %v1787
    %v1975 = vunpack.c.h.b16 %v1787
    %v1976 = vunpack.c.l.b16 %v1788
    %v1977 = vunpack.c.h.b16 %v1788
    %v1978 = vunpack.c.l.b16 %v1789
    %v1979 = vunpack.c.h.b16 %v1789
    %v1980 = vunpack.c.l.b16 %v1790
    %v1981 = vunpack.c.h.b16 %v1790
    %v1982 = vunpack.c.l.b16 %v1791
    %v1983 = vunpack.c.h.b16 %v1791
    %v1984 = vpack.c.b16 %v1858, %v1856
    %v1985 = vpack.c.b16 %v1859, %v1857
    %v1986 = vpack.c.b16 %v1862, %v1860
    %v1987 = vpack.c.b16 %v1863, %v1861
    %v1988 = vpack.c.b16 %v1866, %v1864
    %v1989 = vpack.c.b16 %v1867, %v1865
    %v1990 = vpack.c.b16 %v1870, %v1868
    %v1991 = vpack.c.b16 %v1871, %v1869
    %v1992 = vpack.c.b16 %v1874, %v1872
    %v1993 = vpack.c.b16 %v1875, %v1873
    %v1994 = vpack.c.b16 %v1878, %v1876
    %v1995 = vpack.c.b16 %v1879, %v1877
    %v1996 = vpack.c.b16 %v1882, %v1880
    %v1997 = vpack.c.b16 %v1883, %v1881
    %v1998 = vpack.c.b16 %v1886, %v1884
    %v1999 = vpack.c.b16 %v1887, %v1885
    %v2000 = vpack.c.b16 %v1890, %v1888
    %v2001 = vpack.c.b16 %v1891, %v1889
    %v2002 = vpack.c.b16 %v1894, %v1892
    %v2003 = vpack.c.b16 %v1895, %v1893
    %v2004 = vpack.c.b16 %v1898, %v1896
    %v2005 = vpack.c.b16 %v1899, %v1897
    %v2006 = vpack.c.b16 %v1902, %v1900
    %v2007 = vpack.c.b16 %v1903, %v1901
    %v2008 = vpack.c.b16 %v1906, %v1904
    %v2009 = vpack.c.b16 %v1907, %v1905
    %v2010 = vpack.c.b16 %v1910, %v1908
    %v2011 = vpack.c.b16 %v1911, %v1909
    %v2012 = vpack.c.b16 %v1914, %v1912
    %v2013 = vpack.c.b16 %v1915, %v1913
    %v2014 = vpack.c.b16 %v1918, %v1916
    %v2015 = vpack.c.b16 %v1919, %v1917
    %v2016 = vpack.c.b16 %v1922, %v1920
    %v2017 = vpack.c.b16 %v1923, %v1921
    %v2018 = vpack.c.b16 %v1926, %v1924
    %v2019 = vpack.c.b16 %v1927, %v1925
    %v2020 = vpack.c.b16 %v1930, %v1928
    %v2021 = vpack.c.b16 %v1931, %v1929
    %v2022 = vpack.c.b16 %v1934, %v1932
    %v2023 = vpack.c.b16 %v1935, %v1933
    %v2024 = vpack.c.b16 %v1938, %v1936
    %v2025 = vpack.c.b16 %v1939, %v1937
    %v2026 = vpack.c.b16 %v1942, %v1940
    %v2027 = vpack.c.b16 %v1943, %v1941
    %v2028 = vpack.c.b16 %v1946, %v1944
    %v2029 = vpack.c.b16 %v1947, %v1945
    %v2030 = vpack.c.b16 %v1950, %v1948
    %v2031 = vpack.c.b16 %v1951, %v1949
    %v2032 = vpack.c.b16 %v1954, %v1952
    %v2033 = vpack.c.b16 %v1955, %v1953
    %v2034 = vpack.c.b16 %v1958, %v1956
    %v2035 = vpack.c.b16 %v1959, %v1957
    %v2036 = vpack.c.b16 %v1962, %v1960
    %v2037 = vpack.c.b16 %v1963, %v1961
    %v2038 = vpack.c.b16 %v1966, %v1964
    %v2039 = vpack.c.b16 %v1967, %v1965
    %v2040 = vpack.c.b16 %v1970, %v1968
    %v2041 = vpack.c.b16 %v1971, %v1969
    %v2042 = vpack.c.b16 %v1974, %v1972
    %v2043 = vpack.c.b16 %v1975, %v1973
    %v2044 = vpack.c.b16 %v1978, %v1976
    %v2045 = vpack.c.b16 %v1979, %v1977
    %v2046 = vpack.c.b16 %v1982, %v1980
    %v2047 = vpack.c.b16 %v1983, %v1981
    %2112 = vmatprep.subr.bf16.mxu0 %v1999
    %2113 = vmatpush1.bf16.msra.mxu0 %v1998
    %2114 = vmatprep.subr.bf16.mxu0 %v1997
    %2115 = vmatpush1.bf16.msra.mxu0 %v1996
    %2116 = vmatprep.subr.bf16.mxu0 %v1995
    %2117 = vmatpush1.bf16.msra.mxu0 %v1994
    %2118 = vmatprep.subr.bf16.mxu0 %v1993
    %2119 = vmatpush1.bf16.msra.mxu0 %v1992
    %2120 = vmatprep.subr.bf16.mxu0 %v1991
    %2121 = vmatpush1.bf16.msra.mxu0 %v1990
    %2122 = vmatprep.subr.bf16.mxu0 %v1989
    %2123 = vmatpush1.bf16.msra.mxu0 %v1988
    %2124 = vmatprep.subr.bf16.mxu0 %v1987
    %2125 = vmatpush1.bf16.msra.mxu0 %v1986
    %2126 = vmatprep.subr.bf16.mxu0 %v1985
    %2127 = vmatpush1.bf16.msra.mxu0 %v1984
    %2128 = vmatprep.subr.bf16.mxu0 %v2015
    %2129 = vmatpush2.bf16.msra.mxu0 %v2014
    %2130 = vmatprep.subr.bf16.mxu0 %v2013
    %2131 = vmatpush2.bf16.msra.mxu0 %v2012
    %2132 = vmatprep.subr.bf16.mxu0 %v2011
    %2133 = vmatpush2.bf16.msra.mxu0 %v2010
    %2134 = vmatprep.subr.bf16.mxu0 %v2009
    %2135 = vmatpush2.bf16.msra.mxu0 %v2008
    %2136 = vmatprep.subr.bf16.mxu0 %v2007
    %2137 = vmatpush2.bf16.msra.mxu0 %v2006
    %2138 = vmatprep.subr.bf16.mxu0 %v2005
    %2139 = vmatpush2.bf16.msra.mxu0 %v2004
    %2140 = vmatprep.subr.bf16.mxu0 %v2003
    %2141 = vmatpush2.bf16.msra.mxu0 %v2002
    %2142 = vmatprep.subr.bf16.mxu0 %v2001
    %2143 = vmatpush2.bf16.msra.mxu0 %v2000
    %2144 = vmatprep.mubr.bf16.mxu0 %v1725
    %2145 = vmatmul.mubr.bf16.gmra.mxu0 %v1724
    %v2146 = vpop.f32.mrf.mxu0
    %v2147 = vadd.f32 0.0, %v2146
    %v2148 = vpop.f32.mrf.mxu0
    %v2149 = vadd.f32 0.0, %v2148
    %v2150 = vpop.f32.mrf.mxu0
    %v2151 = vpop.f32.mrf.mxu0
    %2152 = vdwg.mxu0
    %2153 = vmatprep.subr.bf16.mxu0 %v2031
    %2154 = vmatpush1.bf16.msra.mxu0 %v2030
    %2155 = vmatprep.subr.bf16.mxu0 %v2029
    %2156 = vmatpush1.bf16.msra.mxu0 %v2028
    %2157 = vmatprep.subr.bf16.mxu0 %v2027
    %2158 = vmatpush1.bf16.msra.mxu0 %v2026
    %2159 = vmatprep.subr.bf16.mxu0 %v2025
    %2160 = vmatpush1.bf16.msra.mxu0 %v2024
    %2161 = vmatprep.subr.bf16.mxu0 %v2023
    %2162 = vmatpush1.bf16.msra.mxu0 %v2022
    %2163 = vmatprep.subr.bf16.mxu0 %v2021
    %2164 = vmatpush1.bf16.msra.mxu0 %v2020
    %2165 = vmatprep.subr.bf16.mxu0 %v2019
    %2166 = vmatpush1.bf16.msra.mxu0 %v2018
    %2167 = vmatprep.subr.bf16.mxu0 %v2017
    %2168 = vmatpush1.bf16.msra.mxu0 %v2016
    %2169 = vmatprep.subr.bf16.mxu0 %v2047
    %2170 = vmatpush2.bf16.msra.mxu0 %v2046
    %2171 = vmatprep.subr.bf16.mxu0 %v2045
    %2172 = vmatpush2.bf16.msra.mxu0 %v2044
    %2173 = vmatprep.subr.bf16.mxu0 %v2043
    %2174 = vmatpush2.bf16.msra.mxu0 %v2042
    %2175 = vmatprep.subr.bf16.mxu0 %v2041
    %2176 = vmatpush2.bf16.msra.mxu0 %v2040
    %2177 = vmatprep.subr.bf16.mxu0 %v2039
    %2178 = vmatpush2.bf16.msra.mxu0 %v2038
    %2179 = vmatprep.subr.bf16.mxu0 %v2037
    %2180 = vmatpush2.bf16.msra.mxu0 %v2036
    %2181 = vmatprep.subr.bf16.mxu0 %v2035
    %2182 = vmatpush2.bf16.msra.mxu0 %v2034
    %2183 = vmatprep.subr.bf16.mxu0 %v2033
    %2184 = vmatpush2.bf16.msra.mxu0 %v2032
    %2185 = vmatprep.mubr.bf16.mxu0 %v1727
    %2186 = vmatmul.mubr.bf16.gmra.mxu0 %v1726
    %v2187 = vpop.f32.mrf.mxu0
    %v2188 = vadd.f32 %v2147, %v2187
    %v2189 = vpop.f32.mrf.mxu0
    %v2190 = vadd.f32 %v2149, %v2189
    %v2191 = vpop.f32.mrf.mxu0
    %v2192 = vpop.f32.mrf.mxu0
    %2193 = vdwg.mxu0
    %v2194 = vrot.slane %v2188, 4
    %v2195 = vadd.f32 %v2188, %v2194
    %v2196 = vrot.slane %v2195, 2
    %v2197 = vadd.f32 %v2195, %v2196
    %v2198 = vrot.slane %v2197, 1
    %v2199 = vadd.f32 %v2197, %v2198
    %v2200 = vrot.slane %v2190, 4
    %v2201 = vadd.f32 %v2190, %v2200
    %v2202 = vrot.slane %v2201, 2
    %v2203 = vadd.f32 %v2201, %v2202
    %v2204 = vrot.slane %v2203, 1
    %v2205 = vadd.f32 %v2203, %v2204
    %v2206 = vmul.f32 %v2188, %v2188
    %v2207 = vmul.f32 %v2190, %v2190
    %v2208 = vrot.slane %v2206, 4
    %v2209 = vadd.f32 %v2206, %v2208
    %v2210 = vrot.slane %v2209, 2
    %v2211 = vadd.f32 %v2209, %v2210
    %v2212 = vrot.slane %v2211, 1
    %v2213 = vadd.f32 %v2211, %v2212
    %v2214 = vrot.slane %v2207, 4
    %v2215 = vadd.f32 %v2207, %v2214
    %v2216 = vrot.slane %v2215, 2
    %v2217 = vadd.f32 %v2215, %v2216
    %v2218 = vrot.slane %v2217, 1
    %v2219 = vadd.f32 %v2217, %v2218
    %v2220 = vmul.f32 %v2199, 0.125
    %v2221 = vmul.f32 %v2205, 0.125
    %v2222 = vmul.f32 %v2213, 0.125
    %v2223 = vmul.f32 %v2219, 0.125
    %v2224 = vmul.f32 %v2220, %v2220
    %v2225 = vmul.f32 %v2221, %v2221
    %v2226 = vsub.f32 %v2222, %v2224
    %v2227 = vsub.f32 %v2223, %v2225
    %v2228 = vld [vmem:[%s8] sm:$0x3]
    %v2229 = vadd.f32 %v2226, 1e-05
    %v2230 = vadd.f32 %v2227, 1e-05
    %v2231 = vrsqrt.pop %v2229
    %v2232 = vrsqrt.pop %v2230
    %v2235 = vcombine.low %v2231, %v2232
    %v2237 = vunpack.c.l.s4 1966171168
    %v2238 = vunpack.c.0.s8 %v2237
    %v2239 = vlaneseq
    %v2240 = vshrl.u32 %v2239, 7
    %v2241 = vsub.s32 %v2238, %v2240
    %v2242 = vrot.slane %v2235, %v2241
    %v2244 = vunpack.c.l.s4 1966171168
    %v2245 = vunpack.c.0.s8 %v2244
    %v2246 = vlaneseq
    %v2247 = vshrl.u32 %v2246, 7
    %v2248 = vsub.s32 %v2245, %v2247
    %v2249 = vrot.slane %v2242, %v2248
    %v2251 = vmul.f32 %v2228, %v2249
    %v2252 = vld [vmem:[%s9] sm:$0x3]
    %v2254 = vlaneseq
    %v2255 = vshrl.u32 %v2254, 7
    %v2256 = vsub.s32 0, %v2255
    %v2257 = vrot.slane %v2251, %v2256
    %v2258 = vlaneseq
    %v2259 = vshrl.u32 %v2258, 7
    %v2260 = vsub.s32 1, %v2259
    %v2261 = vrot.slane %v2251, %v2260
    %v2264 = vmul.f32 %v2220, %v2257
    %v2265 = vmul.f32 %v2221, %v2261
    %v2268 = vcombine.low %v2264, %v2265
    %v2270 = vunpack.c.l.s4 1966171168
    %v2271 = vunpack.c.0.s8 %v2270
    %v2272 = vlaneseq
    %v2273 = vshrl.u32 %v2272, 7
    %v2274 = vsub.s32 %v2271, %v2273
    %v2275 = vrot.slane %v2268, %v2274
    %v2277 = vunpack.c.l.s4 1966171168
    %v2278 = vunpack.c.0.s8 %v2277
    %v2279 = vlaneseq
    %v2280 = vshrl.u32 %v2279, 7
    %v2281 = vsub.s32 %v2278, %v2280
    %v2282 = vrot.slane %v2275, %v2281
    %v2284 = vsub.f32 %v2252, %v2282
    %v2285 = vmul.f32 %v2188, %v2257
    %v2286 = vmul.f32 %v2190, %v2261
    %v2288 = vlaneseq
    %v2289 = vshrl.u32 %v2288, 7
    %v2290 = vsub.s32 0, %v2289
    %v2291 = vrot.slane %v2284, %v2290
    %v2292 = vlaneseq
    %v2293 = vshrl.u32 %v2292, 7
    %v2294 = vsub.s32 1, %v2293
    %v2295 = vrot.slane %v2284, %v2294
    %v2298 = vadd.f32 %v2285, %v2291
    %v2299 = vadd.f32 %v2286, %v2295
    %v2300 = vmax.f32 %v2298, 0.0
    %v2301 = vmax.f32 %v2299, 0.0
    %v2302 = vpack.c.bf16 %v2300, %v2300
    %v2303 = vpack.c.bf16 %v2301, %v2301
    %v2304 = vld [vmem:[#allocation8] sm:$0xf]
    %v2305 = vld [vmem:[#allocation8 + $0x4] sm:$0xf]
    %v2306 = vld [vmem:[#allocation8 + $0x8] sm:$0xf]
    %v2307 = vld [vmem:[#allocation8 + $0xc] sm:$0xf]
    %v2308 = vld [vmem:[#allocation8 + $0x10] sm:$0xf]
    %v2309 = vld [vmem:[#allocation8 + $0x14] sm:$0xf]
    %v2310 = vld [vmem:[#allocation8 + $0x18] sm:$0xf]
    %v2311 = vld [vmem:[#allocation8 + $0x1c] sm:$0xf]
    %v2312 = vld [vmem:[#allocation8 + $0x20] sm:$0xf]
    %v2313 = vld [vmem:[#allocation8 + $0x24] sm:$0xf]
    %v2314 = vld [vmem:[#allocation8 + $0x28] sm:$0xf]
    %v2315 = vld [vmem:[#allocation8 + $0x2c] sm:$0xf]
    %v2316 = vld [vmem:[#allocation8 + $0x30] sm:$0xf]
    %v2317 = vld [vmem:[#allocation8 + $0x34] sm:$0xf]
    %v2318 = vld [vmem:[#allocation8 + $0x38] sm:$0xf]
    %v2319 = vld [vmem:[#allocation8 + $0x3c] sm:$0xf]
    %v2320 = vld [vmem:[#allocation8 + $0x40] sm:$0xf]
    %v2321 = vld [vmem:[#allocation8 + $0x44] sm:$0xf]
    %v2322 = vld [vmem:[#allocation8 + $0x48] sm:$0xf]
    %v2323 = vld [vmem:[#allocation8 + $0x4c] sm:$0xf]
    %v2324 = vld [vmem:[#allocation8 + $0x50] sm:$0xf]
    %v2325 = vld [vmem:[#allocation8 + $0x54] sm:$0xf]
    %v2326 = vld [vmem:[#allocation8 + $0x58] sm:$0xf]
    %v2327 = vld [vmem:[#allocation8 + $0x5c] sm:$0xf]
    %v2328 = vld [vmem:[#allocation8 + $0x60] sm:$0xf]
    %v2329 = vld [vmem:[#allocation8 + $0x64] sm:$0xf]
    %v2330 = vld [vmem:[#allocation8 + $0x68] sm:$0xf]
    %v2331 = vld [vmem:[#allocation8 + $0x6c] sm:$0xf]
    %v2332 = vld [vmem:[#allocation8 + $0x70] sm:$0xf]
    %v2333 = vld [vmem:[#allocation8 + $0x74] sm:$0xf]
    %v2334 = vld [vmem:[#allocation8 + $0x78] sm:$0xf]
    %v2335 = vld [vmem:[#allocation8 + $0x7c] sm:$0xf]
    %v2368 = vunpack.c.l.b16 %v2304
    %v2369 = vunpack.c.l.b16 %v2305
    %v2370 = vunpack.c.l.b16 %v2306
    %v2371 = vunpack.c.l.b16 %v2307
    %v2372 = vunpack.c.l.b16 %v2308
    %v2373 = vunpack.c.l.b16 %v2309
    %v2374 = vunpack.c.l.b16 %v2310
    %v2375 = vunpack.c.l.b16 %v2311
    %v2376 = vunpack.c.l.b16 %v2312
    %v2377 = vunpack.c.l.b16 %v2313
    %v2378 = vunpack.c.l.b16 %v2314
    %v2379 = vunpack.c.l.b16 %v2315
    %v2380 = vunpack.c.l.b16 %v2316
    %v2381 = vunpack.c.l.b16 %v2317
    %v2382 = vunpack.c.l.b16 %v2318
    %v2383 = vunpack.c.l.b16 %v2319
    %v2384 = vunpack.c.l.b16 %v2320
    %v2385 = vunpack.c.l.b16 %v2321
    %v2386 = vunpack.c.l.b16 %v2322
    %v2387 = vunpack.c.l.b16 %v2323
    %v2388 = vunpack.c.l.b16 %v2324
    %v2389 = vunpack.c.l.b16 %v2325
    %v2390 = vunpack.c.l.b16 %v2326
    %v2391 = vunpack.c.l.b16 %v2327
    %v2392 = vunpack.c.l.b16 %v2328
    %v2393 = vunpack.c.l.b16 %v2329
    %v2394 = vunpack.c.l.b16 %v2330
    %v2395 = vunpack.c.l.b16 %v2331
    %v2396 = vunpack.c.l.b16 %v2332
    %v2397 = vunpack.c.l.b16 %v2333
    %v2398 = vunpack.c.l.b16 %v2334
    %v2399 = vunpack.c.l.b16 %v2335
    %v2400 = vpack.c.b16 %v2369, %v2368
    %v2401 = vpack.c.b16 %v2371, %v2370
    %v2402 = vpack.c.b16 %v2373, %v2372
    %v2403 = vpack.c.b16 %v2375, %v2374
    %v2404 = vpack.c.b16 %v2377, %v2376
    %v2405 = vpack.c.b16 %v2379, %v2378
    %v2406 = vpack.c.b16 %v2381, %v2380
    %v2407 = vpack.c.b16 %v2383, %v2382
    %v2408 = vpack.c.b16 %v2385, %v2384
    %v2409 = vpack.c.b16 %v2387, %v2386
    %v2410 = vpack.c.b16 %v2389, %v2388
    %v2411 = vpack.c.b16 %v2391, %v2390
    %v2412 = vpack.c.b16 %v2393, %v2392
    %v2413 = vpack.c.b16 %v2395, %v2394
    %v2414 = vpack.c.b16 %v2397, %v2396
    %v2415 = vpack.c.b16 %v2399, %v2398
    %2432 = vmatprep.subr.bf16.mxu0 0
    %2433 = vmatpush1.bf16.msra.mxu0 %v2407
    %2434 = vmatprep.subr.bf16.mxu0 0
    %2435 = vmatpush1.bf16.msra.mxu0 %v2406
    %2436 = vmatprep.subr.bf16.mxu0 0
    %2437 = vmatpush1.bf16.msra.mxu0 %v2405
    %2438 = vmatprep.subr.bf16.mxu0 0
    %2439 = vmatpush1.bf16.msra.mxu0 %v2404
    %2440 = vmatprep.subr.bf16.mxu0 0
    %2441 = vmatpush1.bf16.msra.mxu0 %v2403
    %2442 = vmatprep.subr.bf16.mxu0 0
    %2443 = vmatpush1.bf16.msra.mxu0 %v2402
    %2444 = vmatprep.subr.bf16.mxu0 0
    %2445 = vmatpush1.bf16.msra.mxu0 %v2401
    %2446 = vmatprep.subr.bf16.mxu0 0
    %2447 = vmatpush1.bf16.msra.mxu0 %v2400
    %2448 = vmatprep.subr.bf16.mxu0 0
    %2449 = vmatpush2.bf16.msra.mxu0 %v2415
    %2450 = vmatprep.subr.bf16.mxu0 0
    %2451 = vmatpush2.bf16.msra.mxu0 %v2414
    %2452 = vmatprep.subr.bf16.mxu0 0
    %2453 = vmatpush2.bf16.msra.mxu0 %v2413
    %2454 = vmatprep.subr.bf16.mxu0 0
    %2455 = vmatpush2.bf16.msra.mxu0 %v2412
    %2456 = vmatprep.subr.bf16.mxu0 0
    %2457 = vmatpush2.bf16.msra.mxu0 %v2411
    %2458 = vmatprep.subr.bf16.mxu0 0
    %2459 = vmatpush2.bf16.msra.mxu0 %v2410
    %2460 = vmatprep.subr.bf16.mxu0 0
    %2461 = vmatpush2.bf16.msra.mxu0 %v2409
    %2462 = vmatprep.subr.bf16.mxu0 0
    %2463 = vmatpush2.bf16.msra.mxu0 %v2408
    %2464 = vmatprep.mubr.bf16.mxu0 %v2303
    %2465 = vmatmul.mubr.bf16.gmra.mxu0 %v2302
    %v2466 = vpop.f32.mrf.mxu0
    %v2467 = vadd.f32 0.0, %v2466
    %v2468 = vpop.f32.mrf.mxu0
    %v2469 = vpop.f32.mrf.mxu0
    %v2470 = vpop.f32.mrf.mxu0
    %2471 = vdwg.mxu0
    %v2472 = vrot.slane %v2467, 4
    %v2473 = vadd.f32 %v2467, %v2472
    %v2474 = vrot.slane %v2473, 2
    %v2475 = vadd.f32 %v2473, %v2474
    %v2476 = vrot.slane %v2475, 1
    %v2477 = vadd.f32 %v2475, %v2476
    %v2478 = vmul.f32 %v2467, %v2467
    %v2479 = vrot.slane %v2478, 4
    %v2480 = vadd.f32 %v2478, %v2479
    %v2481 = vrot.slane %v2480, 2
    %v2482 = vadd.f32 %v2480, %v2481
    %v2483 = vrot.slane %v2482, 1
    %v2484 = vadd.f32 %v2482, %v2483
    %v2485 = vmul.f32 %v2477, 0.125
    %v2486 = vmul.f32 %v2484, 0.125
    %v2487 = vmul.f32 %v2485, %v2485
    %v2488 = vsub.f32 %v2486, %v2487
    %v2489 = vld [vmem:[%s11] sm:$0x1]
    %v2490 = vadd.f32 %v2488, 1e-05
    %v2491 = vrsqrt.pop %v2490
    %v2492 = vmul.f32 %v2489, %v2491
    %v2493 = vld [vmem:[%s12] sm:$0x1]
    %v2494 = vmul.f32 %v2485, %v2492
    %v2495 = vsub.f32 %v2493, %v2494
    %v2497 = vlaneseq
    %v2498 = vshrl.u32 %v2497, 7
    %v2499 = vsub.s32 0, %v2498
    %v2500 = vrot.slane %v2492, %v2499
    %v2502 = vmul.f32 %v2467, %v2500
    %v2504 = vlaneseq
    %v2505 = vshrl.u32 %v2504, 7
    %v2506 = vsub.s32 0, %v2505
    %v2507 = vrot.slane %v2495, %v2506
    %v2509 = vadd.f32 %v2502, %v2507
    %v2510 = vmax.f32 %v2509, 0.0
    %v2511 = vpack.c.bf16 %v2510, %v2510
    %v2512 = vld [vmem:[#allocation10] sm:$0xf]
    %v2513 = vld [vmem:[#allocation10 + $0x4] sm:$0xf]
    %v2514 = vld [vmem:[#allocation10 + $0x8] sm:$0xf]
    %v2515 = vld [vmem:[#allocation10 + $0xc] sm:$0xf]
    %v2516 = vld [vmem:[#allocation10 + $0x10] sm:$0xf]
    %v2517 = vld [vmem:[#allocation10 + $0x14] sm:$0xf]
    %v2518 = vld [vmem:[#allocation10 + $0x18] sm:$0xf]
    %v2519 = vld [vmem:[#allocation10 + $0x1c] sm:$0xf]
    %v2520 = vld [vmem:[#allocation10 + $0x20] sm:$0xf]
    %v2521 = vld [vmem:[#allocation10 + $0x24] sm:$0xf]
    %v2522 = vld [vmem:[#allocation10 + $0x28] sm:$0xf]
    %v2523 = vld [vmem:[#allocation10 + $0x2c] sm:$0xf]
    %v2524 = vld [vmem:[#allocation10 + $0x30] sm:$0xf]
    %v2525 = vld [vmem:[#allocation10 + $0x34] sm:$0xf]
    %v2526 = vld [vmem:[#allocation10 + $0x38] sm:$0xf]
    %v2527 = vld [vmem:[#allocation10 + $0x3c] sm:$0xf]
    %v2528 = vld [vmem:[%s14] sm:$0x1]
    %v2530 = vlaneseq
    %v2531 = vshrl.u32 %v2530, 7
    %v2532 = vsub.s32 0, %v2531
    %v2533 = vrot.slane %v2528, %v2532
    %v2551 = vunpack.c.l.b16 %v2512
    %v2552 = vunpack.c.l.b16 %v2513
    %v2553 = vunpack.c.l.b16 %v2514
    %v2554 = vunpack.c.l.b16 %v2515
    %v2555 = vunpack.c.l.b16 %v2516
    %v2556 = vunpack.c.l.b16 %v2517
    %v2557 = vunpack.c.l.b16 %v2518
    %v2558 = vunpack.c.l.b16 %v2519
    %v2559 = vunpack.c.l.b16 %v2520
    %v2560 = vunpack.c.l.b16 %v2521
    %v2561 = vunpack.c.l.b16 %v2522
    %v2562 = vunpack.c.l.b16 %v2523
    %v2563 = vunpack.c.l.b16 %v2524
    %v2564 = vunpack.c.l.b16 %v2525
    %v2565 = vunpack.c.l.b16 %v2526
    %v2566 = vunpack.c.l.b16 %v2527
    %v2567 = vpack.c.b16 %v2552, %v2551
    %v2568 = vpack.c.b16 %v2554, %v2553
    %v2569 = vpack.c.b16 %v2556, %v2555
    %v2570 = vpack.c.b16 %v2558, %v2557
    %v2571 = vpack.c.b16 %v2560, %v2559
    %v2572 = vpack.c.b16 %v2562, %v2561
    %v2573 = vpack.c.b16 %v2564, %v2563
    %v2574 = vpack.c.b16 %v2566, %v2565
    %2583 = vmatprep.subr.bf16.mxu0 0
    %2584 = vmatpush1.bf16.msra.mxu0 %v2574
    %2585 = vmatprep.subr.bf16.mxu0 0
    %2586 = vmatpush1.bf16.msra.mxu0 %v2573
    %2587 = vmatprep.subr.bf16.mxu0 0
    %2588 = vmatpush1.bf16.msra.mxu0 %v2572
    %2589 = vmatprep.subr.bf16.mxu0 0
    %2590 = vmatpush1.bf16.msra.mxu0 %v2571
    %2591 = vmatprep.subr.bf16.mxu0 0
    %2592 = vmatpush1.bf16.msra.mxu0 %v2570
    %2593 = vmatprep.subr.bf16.mxu0 0
    %2594 = vmatpush1.bf16.msra.mxu0 %v2569
    %2595 = vmatprep.subr.bf16.mxu0 0
    %2596 = vmatpush1.bf16.msra.mxu0 %v2568
    %2597 = vmatprep.subr.bf16.mxu0 0
    %2598 = vmatpush1.bf16.msra.mxu0 %v2567
    %2599 = vmatprep.subr.bf16.mxu0 0
    %2600 = vmatpush2.bf16.msra.mxu0 0
    %2601 = vmatprep.subr.bf16.mxu0 0
    %2602 = vmatpush2.bf16.msra.mxu0 0
    %2603 = vmatprep.subr.bf16.mxu0 0
    %2604 = vmatpush2.bf16.msra.mxu0 0
    %2605 = vmatprep.subr.bf16.mxu0 0
    %2606 = vmatpush2.bf16.msra.mxu0 0
    %2607 = vmatprep.subr.bf16.mxu0 0
    %2608 = vmatpush2.bf16.msra.mxu0 0
    %2609 = vmatprep.subr.bf16.mxu0 0
    %2610 = vmatpush2.bf16.msra.mxu0 0
    %2611 = vmatprep.subr.bf16.mxu0 0
    %2612 = vmatpush2.bf16.msra.mxu0 0
    %2613 = vmatprep.subr.bf16.mxu0 0
    %2614 = vmatpush2.bf16.msra.mxu0 0
    %2615 = vmatprep.mubr.bf16.mxu0 0
    %2616 = vmatmul.mubr.bf16.gmra.mxu0 %v2511
    %v2617 = vpop.f32.mrf.mxu0
    %v2618 = vadd.f32 %v2533, %v2617
    %v2619 = vpop.f32.mrf.mxu0
    %v2620 = vpop.f32.mrf.mxu0
    %v2621 = vpop.f32.mrf.mxu0
    %2622 = vdwg.mxu0
    %v2623 = vtanh.pop %v2618
    %v2624 = vmul.f32 %v2623, 0.397
    %2625 = vst [vmem:[#allocation11] sm:$0xff] %v2624
    // Predicated region
    $region82: #{bcnet_forward.1} parent=1 // pred_check
      _
    $region83: #{bcnet_forward.1} parent=1 // pred_check_branch
      %2627 = sbr.rel (0) target = $region85
    $region84: #{bcnet_forward.1} parent=1 // pred_region
      %s2629 = ssub.s32 128, 128
      %2630 = vsyncadd [#allocation4], %s2629
      %s2632 = sshll.u32 [#allocation11], 4
      %s2633 = int_to_ptr.vmem [resolvable:$true] %s2632
      %2635 = dma.vmem_to_hbm [thread:$0]  %s2633, 128, %s15, [#allocation4]
    $region85: #{bcnet_forward.1} parent=1 // pred_fallthru
      _
    // Predicated region
    $region86: #{bcnet_forward.1} parent=1 // pred_check
      _
    $region87: #{bcnet_forward.1} parent=1 // pred_check_branch
      %2637 = sbr.rel (0) target = $region89
    $region88: #{bcnet_forward.1} parent=1 // pred_region
      %2638 = dma.done [#allocation4], 128
    $region89: #{bcnet_forward.1} parent=1 // pred_fallthru
      _
    %2639 = vsyncpa [#allocation3], 1
    %2640 = vsyncpa [#allocation6], 1
    %2641 = vsyncpa [#allocation9], 1
    %2642 = vsyncpa [#allocation4], 1

</llo_original>
